<compile_context>
chip_gen: v6e
topology: v6e:2x2x1
jax: 0.10.0
libtpu: 0.0.40
codegen_flags: <defaults>
</compile_context>

<pallas_src>
import functools
import math

import jax
import jax.numpy as jnp
from jax.experimental import pallas as pl
from jax.experimental.pallas import tpu as pltpu


def _round_up(x, m):
    return (x + m - 1) // m * m


# -----------------------------------------------------------------------------
# Wrapper-side data movement (im2col / pooling / weight reshuffle)
# -----------------------------------------------------------------------------
def _im2col(x_nhwc, kh, kw, padding):
    """(dy, dx, ci)-ordered stride-1 conv patches (data movement only)."""
    n, h, w, cin = x_nhwc.shape
    h_out = h + 2 * padding - kh + 1
    w_out = w + 2 * padding - kw + 1
    xp = x_nhwc
    if padding:
        xp = jnp.pad(xp, ((0, 0), (padding, padding), (padding, padding), (0, 0)))
    cols = [xp[:, dy:dy + h_out, dx:dx + w_out, :]
            for dy in range(kh) for dx in range(kw)]
    patches = jnp.concatenate(cols, axis=-1).reshape(n * h_out * w_out,
                                                     kh * kw * cin)
    return patches, h_out, w_out


def _weight_to_gemm(weight_oihw):
    """(Cout,Cin,KH,KW) -> (KH*KW*Cin, Cout), matching the im2col column order.

    WScaleLayer stores w/scale and re-multiplies activations by scale; the
    composition is exactly conv(x, w), so WScale is folded away here and the raw
    weight is used directly (no SMEM scalar, no per-element epilogue multiply).
    """
    cout, cin, kh, kw = weight_oihw.shape
    return jnp.transpose(weight_oihw.astype(jnp.float32), (2, 3, 1, 0)).reshape(
        kh * kw * cin, cout)


def avg_pool_2x2(x_nhwc):
    """AvgPool2d(kernel_size=2, stride=2, ceil_mode=False) for even H, W."""
    n, h, w, c = x_nhwc.shape
    return x_nhwc.reshape(n, h // 2, 2, w // 2, 2, c).mean(axis=(2, 4))


# -----------------------------------------------------------------------------
# Fused NormConvBlock kernel: im2col GEMM + LeakyReLU + PixelNorm
# -----------------------------------------------------------------------------
def _norm_conv_block_kernel(p_ref, w_ref, o_ref, *, alpha, eps, sqrt_c,
                            activate, pixelnorm):
    # p_ref: (TILE_R, K) im2col patches, K = KH*KW*Cin
    # w_ref: (K, Cout)   conv weight (grid-resident block)
    y = jnp.dot(p_ref[...], w_ref[...], preferred_element_type=jnp.float32)
    if activate:
        # LeakyReLU(alpha) == max(y, alpha*y) for 0 < alpha < 1 (single VPU max).
        y = jnp.maximum(y, alpha * y)
    if pixelnorm:
        # PixelNorm: y * sqrt(C) / (||y||_2 over channels + eps).  Channels live
        # on the lane axis -> one fused sum-of-squares pass; approximate EUP
        # reciprocal instead of a vector divide.
        ss = jnp.sum(y * y, axis=-1, keepdims=True)
        inv = pl.reciprocal(jnp.sqrt(ss) + eps, approx=True)
        y = y * (sqrt_c * inv)
    o_ref[...] = y.astype(o_ref.dtype)


def norm_conv_block(x_nhwc, weight_oihw, *, padding, activate=True,
                    pixelnorm=True, alpha=0.2, eps=1e-8, max_tile_rows=256):
    """Conv2d(stride=1, bias=False) + WScale + LeakyReLU + PixelNorm (NHWC)."""
    n = x_nhwc.shape[0]
    cout, cin, kh, kw = weight_oihw.shape
    assert x_nhwc.shape[-1] == cin

    patches, h_out, w_out = _im2col(x_nhwc.astype(jnp.float32), kh, kw, padding)
    w_mat = _weight_to_gemm(weight_oihw)
    k_dim = kh * kw * cin
    rows = n * h_out * w_out

    # Batch many (n, y, x) output positions per grid step (big GEMM blocks
    # amortize the ~0.35us/step pipeline overhead); keep >=2 grid steps when the
    # problem is big enough so the "parallel" axis can shard across v7x's 2 TCs.
    tile_r = max_tile_rows if rows >= max_tile_rows else max(_round_up(rows, 8), 8)
    rows_pad = _round_up(rows, tile_r)
    if rows_pad != rows:
        patches = jnp.pad(patches, ((0, rows_pad - rows), (0, 0)))

    kernel = functools.partial(
        _norm_conv_block_kernel, alpha=alpha, eps=eps,
        sqrt_c=float(math.sqrt(cout)), activate=activate, pixelnorm=pixelnorm)

    out = pl.pallas_call(
        kernel,
        out_shape=jax.ShapeDtypeStruct((rows_pad, cout), jnp.float32),
        grid_spec=pltpu.PrefetchScalarGridSpec(
            num_scalar_prefetch=0,
            grid=(rows_pad // tile_r,),
            in_specs=[
                pl.BlockSpec((tile_r, k_dim), lambda i: (i, 0)),  # patch tile
                pl.BlockSpec((k_dim, cout), lambda i: (0, 0)),    # weight (resident)
            ],
            out_specs=pl.BlockSpec((tile_r, cout), lambda i: (i, 0)),
        ),
        compiler_params=pltpu.CompilerParams(
            dimension_semantics=("parallel",),
            vmem_limit_bytes=32 * 1024 * 1024,
        ),
    )(patches, w_mat)

    return out[:rows].reshape(n, h_out, w_out, cout)


# -----------------------------------------------------------------------------
# Fused head: final NormConvBlock (k=2, p=0 -> 1x1) + fc_mu + fc_sigma
# in a single kernel (3 MXU GEMMs, hidden vector never leaves VMEM).
# -----------------------------------------------------------------------------
def _encoder_head_kernel(p_ref, w4_ref, wmu_ref, bmu_ref, wsg_ref, bsg_ref,
                         mu_ref, sg_ref, *, alpha, eps, sqrt_c):
    h = jnp.dot(p_ref[...], w4_ref[...], preferred_element_type=jnp.float32)
    h = jnp.maximum(h, alpha * h)                        # LeakyReLU(0.2)
    ss = jnp.sum(h * h, axis=-1, keepdims=True)          # PixelNorm
    inv = pl.reciprocal(jnp.sqrt(ss) + eps, approx=True)
    h = h * (sqrt_c * inv)
    mu_ref[...] = (jnp.dot(h, wmu_ref[...], preferred_element_type=jnp.float32)
                   + bmu_ref[...]).astype(mu_ref.dtype)
    sg_ref[...] = (jnp.dot(h, wsg_ref[...], preferred_element_type=jnp.float32)
                   + bsg_ref[...]).astype(sg_ref.dtype)


def encoder_head(x_nhwc, final_weight_oihw, fc_mu, fc_sigma, *, alpha=0.2,
                 eps=1e-8):
    n = x_nhwc.shape[0]
    cout, _, kh, kw = final_weight_oihw.shape
    patches, h_out, w_out = _im2col(x_nhwc.astype(jnp.float32), kh, kw, padding=0)
    assert h_out == 1 and w_out == 1, "final NormConvBlock must reduce to 1x1"
    w4 = _weight_to_gemm(final_weight_oihw)
    nz = fc_mu["weight"].shape[0]
    wmu = fc_mu["weight"].T.astype(jnp.float32)          # y = x @ W.T + b
    wsg = fc_sigma["weight"].T.astype(jnp.float32)
    bmu = fc_mu["bias"].reshape(1, nz).astype(jnp.float32)
    bsg = fc_sigma["bias"].reshape(1, nz).astype(jnp.float32)

    kernel = functools.partial(_encoder_head_kernel, alpha=alpha, eps=eps,
                               sqrt_c=float(math.sqrt(cout)))
    return pl.pallas_call(
        kernel,
        out_shape=(jax.ShapeDtypeStruct((n, nz), jnp.float32),
                   jax.ShapeDtypeStruct((n, nz), jnp.float32)),
        compiler_params=pltpu.CompilerParams(
            vmem_limit_bytes=32 * 1024 * 1024),
    )(patches, w4, wmu, bmu, wsg, bsg)


# -----------------------------------------------------------------------------
# Full netE_nvidia_Generic forward
# -----------------------------------------------------------------------------
def _net_e_forward(x_nchw, params):
    # NHWC so channels sit on the lane axis inside the kernels.
    x = jnp.transpose(x_nchw, (0, 2, 3, 1)).astype(jnp.float32)
    convs = params["convs"]
    for cp in convs[:-1]:
        kh = cp["weight"].shape[2]
        # Module construction: k=3 -> p=1 blocks, final k=2 -> p=0.
        x = norm_conv_block(x, cp["weight"], padding=(kh - 1) // 2)
        x = avg_pool_2x2(x)
    return encoder_head(x, convs[-1]["weight"], params["fc_mu"],
                        params["fc_sigma"])


# One jit over the whole forward: removes per-op dispatch overhead, which
# dominates wall time at these small shapes.
net_e_forward = jax.jit(_net_e_forward)


# -----------------------------------------------------------------------------
# Pure-JAX reference (mirrors the PyTorch module op-for-op, via lax.conv)
# -----------------------------------------------------------------------------
def reference_forward(x_nchw, params, alpha=0.2, eps=1e-8):
    h = x_nchw.astype(jnp.float32)
    convs = params["convs"]
    for i, cp in enumerate(convs):
        w = cp["weight"].astype(jnp.float32)
        scale = jnp.sqrt(jnp.mean(w * w))               # WScale scalar
        w_norm = w / scale
        k = w.shape[2]
        p = (k - 1) // 2
        h = jax.lax.conv_general_dilated(
            h, w_norm, window_strides=(1, 1), padding=((p, p), (p, p)),
            dimension_numbers=("NCHW", "OIHW", "NCHW"))
        h = scale * h                                   # WScale (conv has no bias)
        h = jnp.maximum(h, alpha * h)                   # LeakyReLU(0.2)
        norm = jnp.sqrt(jnp.sum(h * h, axis=1, keepdims=True))
        h = h * math.sqrt(h.shape[1]) / (norm + eps)    # PixelNorm
        if i < len(convs) - 1:
            n_, c_, hh, ww = h.shape
            h = h.reshape(n_, c_, hh // 2, 2, ww // 2, 2).mean(axis=(3, 5))
    hidden = h.reshape(h.shape[0], -1)
    mu = hidden @ params["fc_mu"]["weight"].T + params["fc_mu"]["bias"]
    sg = hidden @ params["fc_sigma"]["weight"].T + params["fc_sigma"]["bias"]
    return mu, sg


if __name__ == "__main__":
    # Small config consistent with the module: nchannels=4, ndf=8, nz=32, res=16.
    N, NC, NDF, NZ, RES = 2, 4, 8, 32, 16

    # Replicate netE_nvidia_Generic.__init__ layer plan.
    plan = [(NC, NDF, 3)]
    count = 1
    while count < RES / 4:
        plan.append((count * NDF, 2 * count * NDF, 3))
        count *= 2
    plan.append((count * NDF, NZ, 2))  # final NormConvBlock, k=2, p=0

    key = jax.random.PRNGKey(0)
    keys = jax.random.split(key, len(plan) + 5)
    convs = []
    for (cin, cout, k), wk in zip(plan, keys):
        std = math.sqrt(2.0 / (1.0 + 0.2 ** 2)) / math.sqrt(cin * k * k)  # He (leaky 0.2)
        convs.append({"weight": std * jax.random.normal(wk, (cout, cin, k, k),
                                                        jnp.float32)})
    kmu_w, kmu_b, ksg_w, ksg_b, kx = keys[len(plan):len(plan) + 5]
    lim = 1.0 / math.sqrt(NZ)
    params = {
        "convs": convs,
        "fc_mu": {"weight": jax.random.uniform(kmu_w, (NZ, NZ), jnp.float32, -lim, lim),
                  "bias": jax.random.uniform(kmu_b, (NZ,), jnp.float32, -lim, lim)},
        "fc_sigma": {"weight": jax.random.uniform(ksg_w, (NZ, NZ), jnp.float32, -lim, lim),
                     "bias": jax.random.uniform(ksg_b, (NZ,), jnp.float32, -lim, lim)},
    }

    x = jax.random.normal(kx, (N, NC, RES, RES), dtype=jnp.float32)

    z_mu, z_sigma = net_e_forward(x, params)
    jax.block_until_ready((z_mu, z_sigma))

    mu_ref, sg_ref = reference_forward(x, params)
    assert z_mu.shape == (N, NZ) and z_sigma.shape == (N, NZ)
    # Tolerance accounts for the approx EUP reciprocal in PixelNorm (4 stacked
    # blocks) and MXU-pass / accumulation-order differences vs the lax.conv ref.
    assert jnp.allclose(z_mu, mu_ref, atol=2e-2, rtol=2e-2), "z_mu mismatch vs reference"
    assert jnp.allclose(z_sigma, sg_ref, atol=2e-2, rtol=2e-2), "z_sigma mismatch vs reference"

    print("KERNEL_OK")
</pallas_src>

<mosaic_0001>
module attributes {stable_mosaic.version = 11 : i64} {
  func.func @_norm_conv_block_kernel(%arg0: i32, %arg1: memref<256x36xf32, #tpu.memory_space<vmem>>, %arg2: memref<36x8xf32, #tpu.memory_space<vmem>>, %arg3: memref<256x8xf32, #tpu.memory_space<vmem>>) attributes {dimension_semantics = [#tpu.dimension_semantics<parallel>], iteration_bounds = array<i64: 2>, scalar_prefetch = 0 : i64, scratch_operands = 0 : i64, tpu.core_type = #tpu.core_type<tc>, window_params = [{transform_indices = @transform_0, window_bounds = array<i64: 256, 36>}, {pipeline_mode = #tpu.pipeline_mode<synchronous>, transform_indices = @transform_1, window_bounds = array<i64: 36, 8>}, {transform_indices = @transform_2, window_bounds = array<i64: 256, 8>}]} {
    %c0 = arith.constant 0 : index
    %c0_0 = arith.constant 0 : index
    %0 = vector.load %arg1[%c0, %c0_0] : memref<256x36xf32, #tpu.memory_space<vmem>>, vector<256x36xf32>
    %c0_1 = arith.constant 0 : index
    %c0_2 = arith.constant 0 : index
    %1 = vector.load %arg2[%c0_1, %c0_2] : memref<36x8xf32, #tpu.memory_space<vmem>>, vector<36x8xf32>
    %cst = arith.constant dense<0.000000e+00> : vector<256x8xf32>
    %2 = tpu.matmul %0, %1, %cst {dimension_numbers = #tpu.dot_dimension_numbers<[1], [0], [0], [1], [0, 0, 1, 1], [], []>} : vector<256x36xf32>, vector<36x8xf32>, vector<256x8xf32> -> vector<256x8xf32>
    %cst_3 = arith.constant 2.000000e-01 : f32
    %3 = vector.broadcast %cst_3 : f32 to vector<256x8xf32>
    %4 = arith.mulf %3, %2 : vector<256x8xf32>
    %5 = arith.maximumf %2, %4 : vector<256x8xf32>
    %6 = arith.mulf %5, %5 : vector<256x8xf32>
    %cst_4 = arith.constant dense<0.000000e+00> : vector<256xf32>
    %7 = vector.multi_reduction <add>, %6, %cst_4 [1] : vector<256x8xf32> to vector<256xf32>
    %8 = vector.shape_cast %7 : vector<256xf32> to vector<256x1xf32>
    %9 = math.sqrt %8 : vector<256x1xf32>
    %cst_5 = arith.constant 9.99999993E-9 : f32
    %10 = vector.broadcast %cst_5 : f32 to vector<256x1xf32>
    %11 = arith.addf %9, %10 : vector<256x1xf32>
    %12 = tpu.reciprocal %11 {approx = true} : vector<256x1xf32> -> vector<256x1xf32>
    %cst_6 = arith.constant 2.82842708 : f32
    %13 = vector.broadcast %cst_6 : f32 to vector<256x1xf32>
    %14 = arith.mulf %13, %12 : vector<256x1xf32>
    %15 = vector.broadcast %14 : vector<256x1xf32> to vector<256x8xf32>
    %16 = arith.mulf %5, %15 : vector<256x8xf32>
    %c0_7 = arith.constant 0 : index
    %c0_8 = arith.constant 0 : index
    %17 = vector.load %arg3[%c0_7, %c0_8] : memref<256x8xf32, #tpu.memory_space<vmem>>, vector<256x8xf32>
    tpu.vector_store %arg3[%c0_7, %c0_8], %16 {strides = array<i32>} : memref<256x8xf32, #tpu.memory_space<vmem>>, vector<256x8xf32>,
    return
  }
  func.func @transform_0(%arg0: i32) -> (i32, i32) {
    %c0_i32 = arith.constant 0 : i32
    %c0_i32_0 = arith.constant 0 : i32
    return %arg0, %c0_i32 : i32, i32
  }
  func.func @transform_1(%arg0: i32) -> (i32, i32) {
    %c0_i32 = arith.constant 0 : i32
    %c0_i32_0 = arith.constant 0 : i32
    %c0_i32_1 = arith.constant 0 : i32
    return %c0_i32, %c0_i32_0 : i32, i32
  }
  func.func @transform_2(%arg0: i32) -> (i32, i32) {
    %c0_i32 = arith.constant 0 : i32
    %c0_i32_0 = arith.constant 0 : i32
    return %arg0, %c0_i32 : i32, i32
  }
}

module attributes {stable_mosaic.version = 11 : i64} {
  func.func @_norm_conv_block_kernel(%arg0: i32, %arg1: memref<128x72xf32, #tpu.memory_space<vmem>>, %arg2: memref<72x16xf32, #tpu.memory_space<vmem>>, %arg3: memref<128x16xf32, #tpu.memory_space<vmem>>) attributes {dimension_semantics = [#tpu.dimension_semantics<parallel>], iteration_bounds = array<i64: 1>, scalar_prefetch = 0 : i64, scratch_operands = 0 : i64, tpu.core_type = #tpu.core_type<tc>, window_params = [{transform_indices = @transform_0, window_bounds = array<i64: 128, 72>}, {pipeline_mode = #tpu.pipeline_mode<synchronous>, transform_indices = @transform_1, window_bounds = array<i64: 72, 16>}, {transform_indices = @transform_2, window_bounds = array<i64: 128, 16>}]} {
    %c0 = arith.constant 0 : index
    %c0_0 = arith.constant 0 : index
    %0 = vector.load %arg1[%c0, %c0_0] : memref<128x72xf32, #tpu.memory_space<vmem>>, vector<128x72xf32>
    %c0_1 = arith.constant 0 : index
    %c0_2 = arith.constant 0 : index
    %1 = vector.load %arg2[%c0_1, %c0_2] : memref<72x16xf32, #tpu.memory_space<vmem>>, vector<72x16xf32>
    %cst = arith.constant dense<0.000000e+00> : vector<128x16xf32>
    %2 = tpu.matmul %0, %1, %cst {dimension_numbers = #tpu.dot_dimension_numbers<[1], [0], [0], [1], [0, 0, 1, 1], [], []>} : vector<128x72xf32>, vector<72x16xf32>, vector<128x16xf32> -> vector<128x16xf32>
    %cst_3 = arith.constant 2.000000e-01 : f32
    %3 = vector.broadcast %cst_3 : f32 to vector<128x16xf32>
    %4 = arith.mulf %3, %2 : vector<128x16xf32>
    %5 = arith.maximumf %2, %4 : vector<128x16xf32>
    %6 = arith.mulf %5, %5 : vector<128x16xf32>
    %cst_4 = arith.constant dense<0.000000e+00> : vector<128xf32>
    %7 = vector.multi_reduction <add>, %6, %cst_4 [1] : vector<128x16xf32> to vector<128xf32>
    %8 = vector.shape_cast %7 : vector<128xf32> to vector<128x1xf32>
    %9 = math.sqrt %8 : vector<128x1xf32>
    %cst_5 = arith.constant 9.99999993E-9 : f32
    %10 = vector.broadcast %cst_5 : f32 to vector<128x1xf32>
    %11 = arith.addf %9, %10 : vector<128x1xf32>
    %12 = tpu.reciprocal %11 {approx = true} : vector<128x1xf32> -> vector<128x1xf32>
    %cst_6 = arith.constant 4.000000e+00 : f32
    %13 = vector.broadcast %cst_6 : f32 to vector<128x1xf32>
    %14 = arith.mulf %13, %12 : vector<128x1xf32>
    %15 = vector.broadcast %14 : vector<128x1xf32> to vector<128x16xf32>
    %16 = arith.mulf %5, %15 : vector<128x16xf32>
    %c0_7 = arith.constant 0 : index
    %c0_8 = arith.constant 0 : index
    %17 = vector.load %arg3[%c0_7, %c0_8] : memref<128x16xf32, #tpu.memory_space<vmem>>, vector<128x16xf32>
    tpu.vector_store %arg3[%c0_7, %c0_8], %16 {strides = array<i32>} : memref<128x16xf32, #tpu.memory_space<vmem>>, vector<128x16xf32>,
    return
  }
  func.func @transform_0(%arg0: i32) -> (i32, i32) {
    %c0_i32 = arith.constant 0 : i32
    %c0_i32_0 = arith.constant 0 : i32
    return %arg0, %c0_i32 : i32, i32
  }
  func.func @transform_1(%arg0: i32) -> (i32, i32) {
    %c0_i32 = arith.constant 0 : i32
    %c0_i32_0 = arith.constant 0 : i32
    %c0_i32_1 = arith.constant 0 : i32
    return %c0_i32, %c0_i32_0 : i32, i32
  }
  func.func @transform_2(%arg0: i32) -> (i32, i32) {
    %c0_i32 = arith.constant 0 : i32
    %c0_i32_0 = arith.constant 0 : i32
    return %arg0, %c0_i32 : i32, i32
  }
}

module attributes {stable_mosaic.version = 11 : i64} {
  func.func @_norm_conv_block_kernel(%arg0: i32, %arg1: memref<32x144xf32, #tpu.memory_space<vmem>>, %arg2: memref<144x32xf32, #tpu.memory_space<vmem>>, %arg3: memref<32x32xf32, #tpu.memory_space<vmem>>) attributes {dimension_semantics = [#tpu.dimension_semantics<parallel>], iteration_bounds = array<i64: 1>, scalar_prefetch = 0 : i64, scratch_operands = 0 : i64, tpu.core_type = #tpu.core_type<tc>, window_params = [{transform_indices = @transform_0, window_bounds = array<i64: 32, 144>}, {pipeline_mode = #tpu.pipeline_mode<synchronous>, transform_indices = @transform_1, window_bounds = array<i64: 144, 32>}, {transform_indices = @transform_2, window_bounds = array<i64: 32, 32>}]} {
    %c0 = arith.constant 0 : index
    %c0_0 = arith.constant 0 : index
    %0 = vector.load %arg1[%c0, %c0_0] : memref<32x144xf32, #tpu.memory_space<vmem>>, vector<32x144xf32>
    %c0_1 = arith.constant 0 : index
    %c0_2 = arith.constant 0 : index
    %1 = vector.load %arg2[%c0_1, %c0_2] : memref<144x32xf32, #tpu.memory_space<vmem>>, vector<144x32xf32>
    %cst = arith.constant dense<0.000000e+00> : vector<32x32xf32>
    %2 = tpu.matmul %0, %1, %cst {dimension_numbers = #tpu.dot_dimension_numbers<[1], [0], [0], [1], [0, 0, 1, 1], [], []>} : vector<32x144xf32>, vector<144x32xf32>, vector<32x32xf32> -> vector<32x32xf32>
    %cst_3 = arith.constant 2.000000e-01 : f32
    %3 = vector.broadcast %cst_3 : f32 to vector<32x32xf32>
    %4 = arith.mulf %3, %2 : vector<32x32xf32>
    %5 = arith.maximumf %2, %4 : vector<32x32xf32>
    %6 = arith.mulf %5, %5 : vector<32x32xf32>
    %cst_4 = arith.constant dense<0.000000e+00> : vector<32xf32>
    %7 = vector.multi_reduction <add>, %6, %cst_4 [1] : vector<32x32xf32> to vector<32xf32>
    %8 = vector.shape_cast %7 : vector<32xf32> to vector<32x1xf32>
    %9 = math.sqrt %8 : vector<32x1xf32>
    %cst_5 = arith.constant 9.99999993E-9 : f32
    %10 = vector.broadcast %cst_5 : f32 to vector<32x1xf32>
    %11 = arith.addf %9, %10 : vector<32x1xf32>
    %12 = tpu.reciprocal %11 {approx = true} : vector<32x1xf32> -> vector<32x1xf32>
    %cst_6 = arith.constant 5.65685415 : f32
    %13 = vector.broadcast %cst_6 : f32 to vector<32x1xf32>
    %14 = arith.mulf %13, %12 : vector<32x1xf32>
    %15 = vector.broadcast %14 : vector<32x1xf32> to vector<32x32xf32>
    %16 = arith.mulf %5, %15 : vector<32x32xf32>
    %c0_7 = arith.constant 0 : index
    %c0_8 = arith.constant 0 : index
    %17 = vector.load %arg3[%c0_7, %c0_8] : memref<32x32xf32, #tpu.memory_space<vmem>>, vector<32x32xf32>
    tpu.vector_store %arg3[%c0_7, %c0_8], %16 {strides = array<i32>} : memref<32x32xf32, #tpu.memory_space<vmem>>, vector<32x32xf32>,
    return
  }
  func.func @transform_0(%arg0: i32) -> (i32, i32) {
    %c0_i32 = arith.constant 0 : i32
    %c0_i32_0 = arith.constant 0 : i32
    return %arg0, %c0_i32 : i32, i32
  }
  func.func @transform_1(%arg0: i32) -> (i32, i32) {
    %c0_i32 = arith.constant 0 : i32
    %c0_i32_0 = arith.constant 0 : i32
    %c0_i32_1 = arith.constant 0 : i32
    return %c0_i32, %c0_i32_0 : i32, i32
  }
  func.func @transform_2(%arg0: i32) -> (i32, i32) {
    %c0_i32 = arith.constant 0 : i32
    %c0_i32_0 = arith.constant 0 : i32
    return %arg0, %c0_i32 : i32, i32
  }
}

module attributes {stable_mosaic.version = 11 : i64} {
  func.func @_encoder_head_kernel(%arg0: memref<2x128xf32, #tpu.memory_space<vmem>>, %arg1: memref<128x32xf32, #tpu.memory_space<vmem>>, %arg2: memref<32x32xf32, #tpu.memory_space<vmem>>, %arg3: memref<1x32xf32, #tpu.memory_space<vmem>>, %arg4: memref<32x32xf32, #tpu.memory_space<vmem>>, %arg5: memref<1x32xf32, #tpu.memory_space<vmem>>, %arg6: memref<2x32xf32, #tpu.memory_space<vmem>>, %arg7: memref<2x32xf32, #tpu.memory_space<vmem>>) attributes {dimension_semantics = [], scalar_prefetch = 0 : i64, scratch_operands = 0 : i64, tpu.core_type = #tpu.core_type<tc>} {
    %c0 = arith.constant 0 : index
    %c0_0 = arith.constant 0 : index
    %0 = vector.load %arg0[%c0, %c0_0] : memref<2x128xf32, #tpu.memory_space<vmem>>, vector<2x128xf32>
    %c0_1 = arith.constant 0 : index
    %c0_2 = arith.constant 0 : index
    %1 = vector.load %arg1[%c0_1, %c0_2] : memref<128x32xf32, #tpu.memory_space<vmem>>, vector<128x32xf32>
    %cst = arith.constant dense<0.000000e+00> : vector<2x32xf32>
    %2 = tpu.matmul %0, %1, %cst {dimension_numbers = #tpu.dot_dimension_numbers<[1], [0], [0], [1], [0, 0, 1, 1], [], []>} : vector<2x128xf32>, vector<128x32xf32>, vector<2x32xf32> -> vector<2x32xf32>
    %cst_3 = arith.constant 2.000000e-01 : f32
    %3 = vector.broadcast %cst_3 : f32 to vector<2x32xf32>
    %4 = arith.mulf %3, %2 : vector<2x32xf32>
    %5 = arith.maximumf %2, %4 : vector<2x32xf32>
    %6 = arith.mulf %5, %5 : vector<2x32xf32>
    %cst_4 = arith.constant dense<0.000000e+00> : vector<2xf32>
    %7 = vector.multi_reduction <add>, %6, %cst_4 [1] : vector<2x32xf32> to vector<2xf32>
    %8 = vector.shape_cast %7 : vector<2xf32> to vector<2x1xf32>
    %9 = math.sqrt %8 : vector<2x1xf32>
    %cst_5 = arith.constant 9.99999993E-9 : f32
    %10 = vector.broadcast %cst_5 : f32 to vector<2x1xf32>
    %11 = arith.addf %9, %10 : vector<2x1xf32>
    %12 = tpu.reciprocal %11 {approx = true} : vector<2x1xf32> -> vector<2x1xf32>
    %cst_6 = arith.constant 5.65685415 : f32
    %13 = vector.broadcast %cst_6 : f32 to vector<2x1xf32>
    %14 = arith.mulf %13, %12 : vector<2x1xf32>
    %15 = vector.broadcast %14 : vector<2x1xf32> to vector<2x32xf32>
    %16 = arith.mulf %5, %15 : vector<2x32xf32>
    %c0_7 = arith.constant 0 : index
    %c0_8 = arith.constant 0 : index
    %17 = vector.load %arg2[%c0_7, %c0_8] : memref<32x32xf32, #tpu.memory_space<vmem>>, vector<32x32xf32>
    %cst_9 = arith.constant dense<0.000000e+00> : vector<2x32xf32>
    %18 = tpu.matmul %16, %17, %cst_9 {dimension_numbers = #tpu.dot_dimension_numbers<[1], [0], [0], [1], [0, 0, 1, 1], [], []>} : vector<2x32xf32>, vector<32x32xf32>, vector<2x32xf32> -> vector<2x32xf32>
    %c0_10 = arith.constant 0 : index
    %c0_11 = arith.constant 0 : index
    %19 = vector.load %arg3[%c0_10, %c0_11] : memref<1x32xf32, #tpu.memory_space<vmem>>, vector<1x32xf32>
    %20 = vector.broadcast %19 : vector<1x32xf32> to vector<2x32xf32>
    %21 = arith.addf %18, %20 : vector<2x32xf32>
    %c0_12 = arith.constant 0 : index
    %c0_13 = arith.constant 0 : index
    %22 = vector.load %arg6[%c0_12, %c0_13] : memref<2x32xf32, #tpu.memory_space<vmem>>, vector<2x32xf32>
    tpu.vector_store %arg6[%c0_12, %c0_13], %21 {strides = array<i32>} : memref<2x32xf32, #tpu.memory_space<vmem>>, vector<2x32xf32>,
    %c0_14 = arith.constant 0 : index
    %c0_15 = arith.constant 0 : index
    %23 = vector.load %arg4[%c0_14, %c0_15] : memref<32x32xf32, #tpu.memory_space<vmem>>, vector<32x32xf32>
    %cst_16 = arith.constant dense<0.000000e+00> : vector<2x32xf32>
    %24 = tpu.matmul %16, %23, %cst_16 {dimension_numbers = #tpu.dot_dimension_numbers<[1], [0], [0], [1], [0, 0, 1, 1], [], []>} : vector<2x32xf32>, vector<32x32xf32>, vector<2x32xf32> -> vector<2x32xf32>
    %c0_17 = arith.constant 0 : index
    %c0_18 = arith.constant 0 : index
    %25 = vector.load %arg5[%c0_17, %c0_18] : memref<1x32xf32, #tpu.memory_space<vmem>>, vector<1x32xf32>
    %26 = vector.broadcast %25 : vector<1x32xf32> to vector<2x32xf32>
    %27 = arith.addf %24, %26 : vector<2x32xf32>
    %c0_19 = arith.constant 0 : index
    %c0_20 = arith.constant 0 : index
    %28 = vector.load %arg7[%c0_19, %c0_20] : memref<2x32xf32, #tpu.memory_space<vmem>>, vector<2x32xf32>
    tpu.vector_store %arg7[%c0_19, %c0_20], %27 {strides = array<i32>} : memref<2x32xf32, #tpu.memory_space<vmem>>, vector<2x32xf32>,
    return
  }
}

</mosaic_0001>

<llo_original>
// kernel: _net_e_forward.4
$region0: #{_net_e_forward.4}
  #allocation0 [shape = 'u32[]', space=smem, size = 0x4, offset = 0x4, fixed_abs, tag = 'smem constant byte address 0x4 - core index']
  #allocation1 [shape = 'u32[144,128]{1,0:T(1,128)}', space=vmem, size = 0x12000, scoped, tag = 'internal scratch']
  %s0 = inlined_call_operand.vmem [shape: f32[512,36], index: 0, kind: input, shape index: {}]
  %s1 = inlined_call_operand.vmem [shape: f32[36,8], index: 1, kind: input, shape index: {}]
  %s2 = inlined_call_operand.vmem [shape: f32[512,8], index: 2, kind: output, shape index: {}]
  %s3 = sld [smem:[#allocation0]]
  $region41: #{_net_e_forward.4} parent=0
    _
  %s5 = ssub.s32 1, %s3
  %s6 = scalar_select 0, %s5, %s3
  loop: start=0, step=1, limit=4
  $region2: #{_net_e_forward.4} parent=0 // loop_pre_header
    _
  $region3: #{_net_e_forward.4} parent=0 // loop_header
    %s8 = sphi 0, %s12
    %p9 = scmp.ge.s32.totalorder %s8, 4
    %s18 = sphi 0, %s20
    %s21 = sphi 0, %s18
    %s22 = sphi 0, %s21
    %s38 = sphi 0, %s22
    %s42 = sphi 0, %s42
    %s44 = sphi 0, %s42
    %s45 = sphi 0, %s44
    %s59 = sphi 0, %s45
    %s65 = sphi 0, %s67
    %s68 = sphi 0, %s65
    %s69 = sphi 0, %s68
    %s85 = sphi 0, %s69
  $region4: #{_net_e_forward.4} parent=0 // loop_header_branch
    %11 = sbr.rel (%p9) target = $region8
  $region5: #{_net_e_forward.4} parent=0 // loop_body
    %s13 = ssub.s32 %s8, 1
    %s14 = ssub.s32 %s8, 2
    %s15 = sadd.s32 %s8, 1
    %s16 = ssub.s32 %s8, %s15
    %p17 = scmp.eq.s32.totalorder %s16, 0
    %s19 = sadd.s32 %s18, 1
    %s20 = scalar_select %p17, %s18, %s19
    %p23 = pneg %p17
    %p24 = scmp.eq.s32.totalorder %s8, 1
    %p25 = por %p23, %p24
    %p26 = scmp.ne.s32.totalorder %s18, %s21
    %p27 = scmp.eq.s32.totalorder %s8, 0
    %p28 = por %p26, %p27
    %p29 = scmp.ne.s32.totalorder %s18, %s21
    %p30 = scmp.eq.s32.totalorder %s13, 1
    %p31 = por %p29, %p30
    %p32 = scmp.ne.s32.totalorder %s21, %s22
    %p33 = scmp.eq.s32.totalorder %s13, 0
    %p34 = por %p32, %p33
    %p35 = scmp.ne.s32.totalorder %s21, %s22
    %p36 = scmp.eq.s32.totalorder %s14, 1
    %p37 = por %p35, %p36
    %p39 = scmp.ne.s32.totalorder %s22, %s38
    %p40 = scmp.eq.s32.totalorder %s14, 0
    %p41 = por %p39, %p40
    %s43 = sadd.s32 %s42, 1
    %p46 = scmp.eq.s32.totalorder %s8, 1
    %p47 = scmp.ne.s32.totalorder %s42, %s44
    %p48 = scmp.eq.s32.totalorder %s8, 0
    %p49 = por %p47, %p48
    %p50 = scmp.ne.s32.totalorder %s42, %s44
    %p51 = scmp.eq.s32.totalorder %s13, 1
    %p52 = por %p50, %p51
    %p53 = scmp.ne.s32.totalorder %s44, %s45
    %p54 = scmp.eq.s32.totalorder %s13, 0
    %p55 = por %p53, %p54
    %p56 = scmp.ne.s32.totalorder %s44, %s45
    %p57 = scmp.eq.s32.totalorder %s14, 1
    %p58 = por %p56, %p57
    %p60 = scmp.ne.s32.totalorder %s45, %s59
    %p61 = scmp.eq.s32.totalorder %s14, 0
    %p62 = por %p60, %p61
    %s63 = ssub.s32 %s8, %s15
    %p64 = scmp.eq.s32.totalorder %s63, 0
    %s66 = sadd.s32 %s65, 1
    %s67 = scalar_select %p64, %s65, %s66
    %p70 = pneg %p64
    %p71 = scmp.eq.s32.totalorder %s8, 1
    %p72 = por %p70, %p71
    %p73 = scmp.ne.s32.totalorder %s65, %s68
    %p74 = scmp.eq.s32.totalorder %s8, 0
    %p75 = por %p73, %p74
    %p76 = scmp.ne.s32.totalorder %s65, %s68
    %p77 = scmp.eq.s32.totalorder %s13, 1
    %p78 = por %p76, %p77
    %p79 = scmp.ne.s32.totalorder %s68, %s69
    %p80 = scmp.eq.s32.totalorder %s13, 0
    %p81 = por %p79, %p80
    %p82 = scmp.ne.s32.totalorder %s68, %s69
    %p83 = scmp.eq.s32.totalorder %s14, 1
    %p84 = por %p82, %p83
    %p86 = scmp.ne.s32.totalorder %s69, %s85
    %p87 = scmp.eq.s32.totalorder %s14, 0
    %p88 = por %p86, %p87
    %p89 = scmp.le.s32.totalorder 1, %s8
    %p90 = scmp.lt.s32.totalorder %s8, 3
    %p91 = pnand %p89, %p90
    %p92 = pneg %p91
    // Predicated region
    $region9: #{_net_e_forward.4} parent=5 // pred_check
      _
    $region10: #{_net_e_forward.4} parent=5 // pred_check_branch
      %94 = sbr.rel (%p91) target = $region12
    $region11: #{_net_e_forward.4} parent=5 // pred_region
      %s95 = ssub.s32 %s8, 1
      // Predicated region
      $region13: #{_net_e_forward.4} parent=11 // pred_check
        %p96 = pneg %p55
      $region14: #{_net_e_forward.4} parent=11 // pred_check_branch
        %98 = sbr.rel (%p96) target = $region16
      $region15: #{_net_e_forward.4} parent=11 // pred_region
        _
      $region16: #{_net_e_forward.4} parent=11 // pred_fallthru
        _
    $region12: #{_net_e_forward.4} parent=5 // pred_fallthru
      _
    %p99 = scmp.lt.s32.totalorder %s8, 2
    // Predicated region
    $region17: #{_net_e_forward.4} parent=5 // pred_check
      %p100 = pneg %p99
    $region18: #{_net_e_forward.4} parent=5 // pred_check_branch
      %102 = sbr.rel (%p100) target = $region20
    $region19: #{_net_e_forward.4} parent=5 // pred_region
      // Predicated region
      $region21: #{_net_e_forward.4} parent=19 // pred_check
        %p103 = pneg %p28
      $region22: #{_net_e_forward.4} parent=19 // pred_check_branch
        %105 = sbr.rel (%p103) target = $region24
      $region23: #{_net_e_forward.4} parent=19 // pred_region
        %s106 = smul.u32 32, %s8
        %p107 = scmp.lt.s32.totalorder %s106, 63
        %s108 = scalar_select %p107, %s106, 63
        %s109 = smul.addr %s108, 8
        %s110 = scalar_lea.vmem %s0, %s109
        %s111 = smul.u32 32, %s8
      $region24: #{_net_e_forward.4} parent=19 // pred_fallthru
        _
    $region20: #{_net_e_forward.4} parent=5 // pred_fallthru
      _
    %p112 = scmp.le.s32.totalorder 1, %s8
    %p113 = scmp.lt.s32.totalorder %s8, 3
    %p114 = pnand %p112, %p113
    %p115 = pneg %p114
    // Predicated region
    $region25: #{_net_e_forward.4} parent=5 // pred_check
      _
    $region26: #{_net_e_forward.4} parent=5 // pred_check_branch
      %117 = sbr.rel (%p114) target = $region28
    $region27: #{_net_e_forward.4} parent=5 // pred_region
      %s118 = ssub.s32 %s8, 1
      %s119 = smul.u32 32, %s13
      %p120 = scmp.lt.s32.totalorder %s119, 63
      %s121 = scalar_select %p120, %s119, 63
      %s122 = smul.addr %s121, 8
      %s123 = scalar_lea.vmem %s0, %s122
      %p124 = pneg %p34
      %p125 = pneg %p31
      %p126 = pneg %p55
      %p127 = pneg %p52
      %p128 = pneg %p81
      %p129 = pneg %p78
      %s130 = smul.u32 32, %s13
      %p131 = scmp.lt.s32.totalorder %s130, 63
      %s132 = scalar_select %p131, %s130, 63
      %s133 = smul.addr %s132, 8
      %s134 = scalar_lea.vmem %s2, %s133
      %s135 = smul.u32 32, %s13
      %p136 = scmp.lt.s32.totalorder %s135, 63
      %s137 = scalar_select %p136, %s135, 63
      %s138 = smul.addr %s137, 8
      %s139 = scalar_lea.vmem %s0, %s138
      %s140 = smul.u32 32, %s13
      %s141 = smul.u32 32, %s13
      %p142 = scmp.lt.s32.totalorder %s141, 63
      %s143 = scalar_select %p142, %s141, 63
      %s144 = smul.addr %s143, 8
      %s145 = scalar_lea.vmem %s2, %s144
      %s146 = smul.u32 32, %s13
      %v147 = vld [vmem:[%s139] sm:$0xff]
      %v148 = vld [vmem:[%s139 + $0x8] sm:$0xff]
      %v149 = vld [vmem:[%s139 + $0x10] sm:$0xff]
      %v150 = vld [vmem:[%s139 + $0x18] sm:$0xff]
      %v151 = vld [vmem:[%s139 + $0x20] sm:$0xff]
      %v152 = vld [vmem:[%s139 + $0x28] sm:$0xff]
      %v153 = vld [vmem:[%s139 + $0x30] sm:$0xff]
      %v154 = vld [vmem:[%s139 + $0x38] sm:$0xff]
      %v155 = vld [vmem:[%s139 + $0x40] sm:$0xff]
      %v156 = vld [vmem:[%s139 + $0x48] sm:$0xff]
      %v157 = vld [vmem:[%s139 + $0x50] sm:$0xff]
      %v158 = vld [vmem:[%s139 + $0x58] sm:$0xff]
      %v159 = vld [vmem:[%s139 + $0x60] sm:$0xff]
      %v160 = vld [vmem:[%s139 + $0x68] sm:$0xff]
      %v161 = vld [vmem:[%s139 + $0x70] sm:$0xff]
      %v162 = vld [vmem:[%s139 + $0x78] sm:$0xff]
      %v163 = vld [vmem:[%s139 + $0x80] sm:$0xff]
      %v164 = vld [vmem:[%s139 + $0x88] sm:$0xff]
      %v165 = vld [vmem:[%s139 + $0x90] sm:$0xff]
      %v166 = vld [vmem:[%s139 + $0x98] sm:$0xff]
      %v167 = vld [vmem:[%s139 + $0xa0] sm:$0xff]
      %v168 = vld [vmem:[%s139 + $0xa8] sm:$0xff]
      %v169 = vld [vmem:[%s139 + $0xb0] sm:$0xff]
      %v170 = vld [vmem:[%s139 + $0xb8] sm:$0xff]
      %v171 = vld [vmem:[%s139 + $0xc0] sm:$0xff]
      %v172 = vld [vmem:[%s139 + $0xc8] sm:$0xff]
      %v173 = vld [vmem:[%s139 + $0xd0] sm:$0xff]
      %v174 = vld [vmem:[%s139 + $0xd8] sm:$0xff]
      %v175 = vld [vmem:[%s139 + $0xe0] sm:$0xff]
      %v176 = vld [vmem:[%s139 + $0xe8] sm:$0xff]
      %v177 = vld [vmem:[%s139 + $0xf0] sm:$0xff]
      %v178 = vld [vmem:[%s139 + $0xf8] sm:$0xff]
      %v179 = vld [vmem:[%s1] sm:$0xff]
      %v180 = vld [vmem:[%s1 + $0x8] sm:$0xff]
      %v181 = vld [vmem:[%s1 + $0x10] sm:$0xff]
      %v182 = vld [vmem:[%s1 + $0x18] sm:$0xff]
      %v183 = vld [vmem:[%s1 + $0x20] sm:$0xf]
      %vm184 = vcmask 293888
      %v186 = vsel %vm184, %v147, 0
      %v189 = vsel %vm184, %v148, 0
      %v192 = vsel %vm184, %v149, 0
      %v195 = vsel %vm184, %v150, 0
      %v198 = vsel %vm184, %v151, 0
      %v201 = vsel %vm184, %v152, 0
      %v204 = vsel %vm184, %v153, 0
      %v207 = vsel %vm184, %v154, 0
      %v210 = vsel %vm184, %v155, 0
      %v213 = vsel %vm184, %v156, 0
      %v216 = vsel %vm184, %v157, 0
      %v219 = vsel %vm184, %v158, 0
      %v222 = vsel %vm184, %v159, 0
      %v225 = vsel %vm184, %v160, 0
      %v228 = vsel %vm184, %v161, 0
      %v231 = vsel %vm184, %v162, 0
      %v234 = vsel %vm184, %v163, 0
      %v237 = vsel %vm184, %v164, 0
      %v240 = vsel %vm184, %v165, 0
      %v243 = vsel %vm184, %v166, 0
      %v246 = vsel %vm184, %v167, 0
      %v249 = vsel %vm184, %v168, 0
      %v252 = vsel %vm184, %v169, 0
      %v255 = vsel %vm184, %v170, 0
      %v258 = vsel %vm184, %v171, 0
      %v261 = vsel %vm184, %v172, 0
      %v264 = vsel %vm184, %v173, 0
      %v267 = vsel %vm184, %v174, 0
      %v270 = vsel %vm184, %v175, 0
      %v273 = vsel %vm184, %v176, 0
      %v276 = vsel %vm184, %v177, 0
      %v279 = vsel %vm184, %v178, 0
      %vm281 = vcmask 1043456
      %v283 = vsel %vm281, %v183, 0
      %285 = vmatprep.subr.mxu0 0.0
      %286 = vmatpush1.msra.mxu0 0.0
      %287 = vmatprep.subr.mxu0 0.0
      %288 = vmatpush1.msra.mxu0 0.0
      %289 = vmatprep.subr.mxu0 0.0
      %290 = vmatpush1.msra.mxu0 0.0
      %291 = vmatprep.subr.mxu0 0.0
      %292 = vmatpush1.msra.mxu0 0.0
      %293 = vmatprep.subr.mxu0 0.0
      %294 = vmatpush1.msra.mxu0 0.0
      %295 = vmatprep.subr.mxu0 0.0
      %296 = vmatpush1.msra.mxu0 0.0
      %297 = vmatprep.subr.mxu0 0.0
      %298 = vmatpush1.msra.mxu0 0.0
      %299 = vmatprep.subr.mxu0 0.0
      %300 = vmatpush1.msra.mxu0 0.0
      %301 = vmatprep.subr.mxu0 0.0
      %302 = vmatpush1.msra.mxu0 0.0
      %303 = vmatprep.subr.mxu0 0.0
      %304 = vmatpush1.msra.mxu0 0.0
      %305 = vmatprep.subr.mxu0 0.0
      %306 = vmatpush1.msra.mxu0 0.0
      %307 = vmatprep.subr.mxu0 0.0
      %308 = vmatpush1.msra.mxu0 %v283
      %309 = vmatprep.subr.mxu0 0.0
      %310 = vmatpush1.msra.mxu0 %v182
      %311 = vmatprep.subr.mxu0 0.0
      %312 = vmatpush1.msra.mxu0 %v181
      %313 = vmatprep.subr.mxu0 0.0
      %314 = vmatpush1.msra.mxu0 %v180
      %315 = vmatprep.subr.mxu0 0.0
      %316 = vmatpush1.msra.mxu0 %v179
      %317 = vmatprep.subr.mxu0 0.0
      %318 = vmatpush2.msra.mxu0 0.0
      %319 = vmatprep.subr.mxu0 0.0
      %320 = vmatpush2.msra.mxu0 0.0
      %321 = vmatprep.subr.mxu0 0.0
      %322 = vmatpush2.msra.mxu0 0.0
      %323 = vmatprep.subr.mxu0 0.0
      %324 = vmatpush2.msra.mxu0 0.0
      %325 = vmatprep.subr.mxu0 0.0
      %326 = vmatpush2.msra.mxu0 0.0
      %327 = vmatprep.subr.mxu0 0.0
      %328 = vmatpush2.msra.mxu0 0.0
      %329 = vmatprep.subr.mxu0 0.0
      %330 = vmatpush2.msra.mxu0 0.0
      %331 = vmatprep.subr.mxu0 0.0
      %332 = vmatpush2.msra.mxu0 0.0
      %333 = vmatprep.subr.mxu0 0.0
      %334 = vmatpush2.msra.mxu0 0.0
      %335 = vmatprep.subr.mxu0 0.0
      %336 = vmatpush2.msra.mxu0 0.0
      %337 = vmatprep.subr.mxu0 0.0
      %338 = vmatpush2.msra.mxu0 0.0
      %339 = vmatprep.subr.mxu0 0.0
      %340 = vmatpush2.msra.mxu0 0.0
      %341 = vmatprep.subr.mxu0 0.0
      %342 = vmatpush2.msra.mxu0 0.0
      %343 = vmatprep.subr.mxu0 0.0
      %344 = vmatpush2.msra.mxu0 0.0
      %345 = vmatprep.subr.mxu0 0.0
      %346 = vmatpush2.msra.mxu0 0.0
      %347 = vmatprep.subr.mxu0 0.0
      %348 = vmatpush2.msra.mxu0 0.0
      %349 = vmatprep.mubr.f32.mxu0 0.0
      %350 = vmatmul.mubr.f32.gmra.mxu0 %v186
      %v351 = vpop.f32.mrf.mxu0
      %v352 = vadd.f32 0.0, %v351
      %v353 = vpop.f32.mrf.mxu0
      %354 = vmatprep.mubr.f32.mxu0 0.0
      %355 = vmatmul.mubr.f32.gmra.mxu0 %v189
      %v356 = vpop.f32.mrf.mxu0
      %v357 = vadd.f32 0.0, %v356
      %v358 = vpop.f32.mrf.mxu0
      %359 = vmatprep.mubr.f32.mxu0 0.0
      %360 = vmatmul.mubr.f32.gmra.mxu0 %v192
      %v361 = vpop.f32.mrf.mxu0
      %v362 = vadd.f32 0.0, %v361
      %v363 = vpop.f32.mrf.mxu0
      %364 = vmatprep.mubr.f32.mxu0 0.0
      %365 = vmatmul.mubr.f32.gmra.mxu0 %v195
      %v366 = vpop.f32.mrf.mxu0
      %v367 = vadd.f32 0.0, %v366
      %v368 = vpop.f32.mrf.mxu0
      %369 = vmatprep.mubr.f32.mxu0 0.0
      %370 = vmatmul.mubr.f32.gmra.mxu0 %v198
      %v371 = vpop.f32.mrf.mxu0
      %v372 = vadd.f32 0.0, %v371
      %v373 = vpop.f32.mrf.mxu0
      %374 = vmatprep.mubr.f32.mxu0 0.0
      %375 = vmatmul.mubr.f32.gmra.mxu0 %v201
      %v376 = vpop.f32.mrf.mxu0
      %v377 = vadd.f32 0.0, %v376
      %v378 = vpop.f32.mrf.mxu0
      %379 = vmatprep.mubr.f32.mxu0 0.0
      %380 = vmatmul.mubr.f32.gmra.mxu0 %v204
      %v381 = vpop.f32.mrf.mxu0
      %v382 = vadd.f32 0.0, %v381
      %v383 = vpop.f32.mrf.mxu0
      %384 = vmatprep.mubr.f32.mxu0 0.0
      %385 = vmatmul.mubr.f32.gmra.mxu0 %v207
      %v386 = vpop.f32.mrf.mxu0
      %v387 = vadd.f32 0.0, %v386
      %v388 = vpop.f32.mrf.mxu0
      %389 = vmatprep.mubr.f32.mxu0 0.0
      %390 = vmatmul.mubr.f32.gmra.mxu0 %v210
      %v391 = vpop.f32.mrf.mxu0
      %v392 = vadd.f32 0.0, %v391
      %v393 = vpop.f32.mrf.mxu0
      %394 = vmatprep.mubr.f32.mxu0 0.0
      %395 = vmatmul.mubr.f32.gmra.mxu0 %v213
      %v396 = vpop.f32.mrf.mxu0
      %v397 = vadd.f32 0.0, %v396
      %v398 = vpop.f32.mrf.mxu0
      %399 = vmatprep.mubr.f32.mxu0 0.0
      %400 = vmatmul.mubr.f32.gmra.mxu0 %v216
      %v401 = vpop.f32.mrf.mxu0
      %v402 = vadd.f32 0.0, %v401
      %v403 = vpop.f32.mrf.mxu0
      %404 = vmatprep.mubr.f32.mxu0 0.0
      %405 = vmatmul.mubr.f32.gmra.mxu0 %v219
      %v406 = vpop.f32.mrf.mxu0
      %v407 = vadd.f32 0.0, %v406
      %v408 = vpop.f32.mrf.mxu0
      %409 = vmatprep.mubr.f32.mxu0 0.0
      %410 = vmatmul.mubr.f32.gmra.mxu0 %v222
      %v411 = vpop.f32.mrf.mxu0
      %v412 = vadd.f32 0.0, %v411
      %v413 = vpop.f32.mrf.mxu0
      %414 = vmatprep.mubr.f32.mxu0 0.0
      %415 = vmatmul.mubr.f32.gmra.mxu0 %v225
      %v416 = vpop.f32.mrf.mxu0
      %v417 = vadd.f32 0.0, %v416
      %v418 = vpop.f32.mrf.mxu0
      %419 = vmatprep.mubr.f32.mxu0 0.0
      %420 = vmatmul.mubr.f32.gmra.mxu0 %v228
      %v421 = vpop.f32.mrf.mxu0
      %v422 = vadd.f32 0.0, %v421
      %v423 = vpop.f32.mrf.mxu0
      %424 = vmatprep.mubr.f32.mxu0 0.0
      %425 = vmatmul.mubr.f32.gmra.mxu0 %v231
      %v426 = vpop.f32.mrf.mxu0
      %v427 = vadd.f32 0.0, %v426
      %v428 = vpop.f32.mrf.mxu0
      %429 = vmatprep.mubr.f32.mxu0 0.0
      %430 = vmatmul.mubr.f32.gmra.mxu0 %v234
      %v431 = vpop.f32.mrf.mxu0
      %v432 = vadd.f32 0.0, %v431
      %v433 = vpop.f32.mrf.mxu0
      %434 = vmatprep.mubr.f32.mxu0 0.0
      %435 = vmatmul.mubr.f32.gmra.mxu0 %v237
      %v436 = vpop.f32.mrf.mxu0
      %v437 = vadd.f32 0.0, %v436
      %v438 = vpop.f32.mrf.mxu0
      %439 = vmatprep.mubr.f32.mxu0 0.0
      %440 = vmatmul.mubr.f32.gmra.mxu0 %v240
      %v441 = vpop.f32.mrf.mxu0
      %v442 = vadd.f32 0.0, %v441
      %v443 = vpop.f32.mrf.mxu0
      %444 = vmatprep.mubr.f32.mxu0 0.0
      %445 = vmatmul.mubr.f32.gmra.mxu0 %v243
      %v446 = vpop.f32.mrf.mxu0
      %v447 = vadd.f32 0.0, %v446
      %v448 = vpop.f32.mrf.mxu0
      %449 = vmatprep.mubr.f32.mxu0 0.0
      %450 = vmatmul.mubr.f32.gmra.mxu0 %v246
      %v451 = vpop.f32.mrf.mxu0
      %v452 = vadd.f32 0.0, %v451
      %v453 = vpop.f32.mrf.mxu0
      %454 = vmatprep.mubr.f32.mxu0 0.0
      %455 = vmatmul.mubr.f32.gmra.mxu0 %v249
      %v456 = vpop.f32.mrf.mxu0
      %v457 = vadd.f32 0.0, %v456
      %v458 = vpop.f32.mrf.mxu0
      %459 = vmatprep.mubr.f32.mxu0 0.0
      %460 = vmatmul.mubr.f32.gmra.mxu0 %v252
      %v461 = vpop.f32.mrf.mxu0
      %v462 = vadd.f32 0.0, %v461
      %v463 = vpop.f32.mrf.mxu0
      %464 = vmatprep.mubr.f32.mxu0 0.0
      %465 = vmatmul.mubr.f32.gmra.mxu0 %v255
      %v466 = vpop.f32.mrf.mxu0
      %v467 = vadd.f32 0.0, %v466
      %v468 = vpop.f32.mrf.mxu0
      %469 = vmatprep.mubr.f32.mxu0 0.0
      %470 = vmatmul.mubr.f32.gmra.mxu0 %v258
      %v471 = vpop.f32.mrf.mxu0
      %v472 = vadd.f32 0.0, %v471
      %v473 = vpop.f32.mrf.mxu0
      %474 = vmatprep.mubr.f32.mxu0 0.0
      %475 = vmatmul.mubr.f32.gmra.mxu0 %v261
      %v476 = vpop.f32.mrf.mxu0
      %v477 = vadd.f32 0.0, %v476
      %v478 = vpop.f32.mrf.mxu0
      %479 = vmatprep.mubr.f32.mxu0 0.0
      %480 = vmatmul.mubr.f32.gmra.mxu0 %v264
      %v481 = vpop.f32.mrf.mxu0
      %v482 = vadd.f32 0.0, %v481
      %v483 = vpop.f32.mrf.mxu0
      %484 = vmatprep.mubr.f32.mxu0 0.0
      %485 = vmatmul.mubr.f32.gmra.mxu0 %v267
      %v486 = vpop.f32.mrf.mxu0
      %v487 = vadd.f32 0.0, %v486
      %v488 = vpop.f32.mrf.mxu0
      %489 = vmatprep.mubr.f32.mxu0 0.0
      %490 = vmatmul.mubr.f32.gmra.mxu0 %v270
      %v491 = vpop.f32.mrf.mxu0
      %v492 = vadd.f32 0.0, %v491
      %v493 = vpop.f32.mrf.mxu0
      %494 = vmatprep.mubr.f32.mxu0 0.0
      %495 = vmatmul.mubr.f32.gmra.mxu0 %v273
      %v496 = vpop.f32.mrf.mxu0
      %v497 = vadd.f32 0.0, %v496
      %v498 = vpop.f32.mrf.mxu0
      %499 = vmatprep.mubr.f32.mxu0 0.0
      %500 = vmatmul.mubr.f32.gmra.mxu0 %v276
      %v501 = vpop.f32.mrf.mxu0
      %v502 = vadd.f32 0.0, %v501
      %v503 = vpop.f32.mrf.mxu0
      %504 = vmatprep.mubr.f32.mxu0 0.0
      %505 = vmatmul.mubr.f32.gmra.mxu0 %v279
      %v506 = vpop.f32.mrf.mxu0
      %v507 = vadd.f32 0.0, %v506
      %v508 = vpop.f32.mrf.mxu0
      %509 = vdwg.mxu0
      %v510 = vmul.f32 %v352, 0.2
      %v511 = vmul.f32 %v357, 0.2
      %v512 = vmul.f32 %v362, 0.2
      %v513 = vmul.f32 %v367, 0.2
      %v514 = vmul.f32 %v372, 0.2
      %v515 = vmul.f32 %v377, 0.2
      %v516 = vmul.f32 %v382, 0.2
      %v517 = vmul.f32 %v387, 0.2
      %v518 = vmul.f32 %v392, 0.2
      %v519 = vmul.f32 %v397, 0.2
      %v520 = vmul.f32 %v402, 0.2
      %v521 = vmul.f32 %v407, 0.2
      %v522 = vmul.f32 %v412, 0.2
      %v523 = vmul.f32 %v417, 0.2
      %v524 = vmul.f32 %v422, 0.2
      %v525 = vmul.f32 %v427, 0.2
      %v526 = vmul.f32 %v432, 0.2
      %v527 = vmul.f32 %v437, 0.2
      %v528 = vmul.f32 %v442, 0.2
      %v529 = vmul.f32 %v447, 0.2
      %v530 = vmul.f32 %v452, 0.2
      %v531 = vmul.f32 %v457, 0.2
      %v532 = vmul.f32 %v462, 0.2
      %v533 = vmul.f32 %v467, 0.2
      %v534 = vmul.f32 %v472, 0.2
      %v535 = vmul.f32 %v477, 0.2
      %v536 = vmul.f32 %v482, 0.2
      %v537 = vmul.f32 %v487, 0.2
      %v538 = vmul.f32 %v492, 0.2
      %v539 = vmul.f32 %v497, 0.2
      %v540 = vmul.f32 %v502, 0.2
      %v541 = vmul.f32 %v507, 0.2
      %v542 = vmax.f32 %v352, %v510
      %v543 = vmax.f32 %v357, %v511
      %v544 = vmax.f32 %v362, %v512
      %v545 = vmax.f32 %v367, %v513
      %v546 = vmax.f32 %v372, %v514
      %v547 = vmax.f32 %v377, %v515
      %v548 = vmax.f32 %v382, %v516
      %v549 = vmax.f32 %v387, %v517
      %v550 = vmax.f32 %v392, %v518
      %v551 = vmax.f32 %v397, %v519
      %v552 = vmax.f32 %v402, %v520
      %v553 = vmax.f32 %v407, %v521
      %v554 = vmax.f32 %v412, %v522
      %v555 = vmax.f32 %v417, %v523
      %v556 = vmax.f32 %v422, %v524
      %v557 = vmax.f32 %v427, %v525
      %v558 = vmax.f32 %v432, %v526
      %v559 = vmax.f32 %v437, %v527
      %v560 = vmax.f32 %v442, %v528
      %v561 = vmax.f32 %v447, %v529
      %v562 = vmax.f32 %v452, %v530
      %v563 = vmax.f32 %v457, %v531
      %v564 = vmax.f32 %v462, %v532
      %v565 = vmax.f32 %v467, %v533
      %v566 = vmax.f32 %v472, %v534
      %v567 = vmax.f32 %v477, %v535
      %v568 = vmax.f32 %v482, %v536
      %v569 = vmax.f32 %v487, %v537
      %v570 = vmax.f32 %v492, %v538
      %v571 = vmax.f32 %v497, %v539
      %v572 = vmax.f32 %v502, %v540
      %v573 = vmax.f32 %v507, %v541
      %v574 = vmul.f32 %v542, %v542
      %v575 = vmul.f32 %v543, %v543
      %v576 = vmul.f32 %v544, %v544
      %v577 = vmul.f32 %v545, %v545
      %v578 = vmul.f32 %v546, %v546
      %v579 = vmul.f32 %v547, %v547
      %v580 = vmul.f32 %v548, %v548
      %v581 = vmul.f32 %v549, %v549
      %v582 = vmul.f32 %v550, %v550
      %v583 = vmul.f32 %v551, %v551
      %v584 = vmul.f32 %v552, %v552
      %v585 = vmul.f32 %v553, %v553
      %v586 = vmul.f32 %v554, %v554
      %v587 = vmul.f32 %v555, %v555
      %v588 = vmul.f32 %v556, %v556
      %v589 = vmul.f32 %v557, %v557
      %v590 = vmul.f32 %v558, %v558
      %v591 = vmul.f32 %v559, %v559
      %v592 = vmul.f32 %v560, %v560
      %v593 = vmul.f32 %v561, %v561
      %v594 = vmul.f32 %v562, %v562
      %v595 = vmul.f32 %v563, %v563
      %v596 = vmul.f32 %v564, %v564
      %v597 = vmul.f32 %v565, %v565
      %v598 = vmul.f32 %v566, %v566
      %v599 = vmul.f32 %v567, %v567
      %v600 = vmul.f32 %v568, %v568
      %v601 = vmul.f32 %v569, %v569
      %v602 = vmul.f32 %v570, %v570
      %v603 = vmul.f32 %v571, %v571
      %v604 = vmul.f32 %v572, %v572
      %v605 = vmul.f32 %v573, %v573
      %vm606 = vcmask 64512
      %v607 = vsel %vm606, %v574, 0.0
      %608 = vadd.xlane.f32.xlu0 %v607
      %v609 = vpop.xlane.xlu0 %608
      %v610 = vsel %vm606, %v575, 0.0
      %611 = vadd.xlane.f32.xlu0 %v610
      %v612 = vpop.xlane.xlu0 %611
      %v613 = vsel %vm606, %v576, 0.0
      %614 = vadd.xlane.f32.xlu0 %v613
      %v615 = vpop.xlane.xlu0 %614
      %v616 = vsel %vm606, %v577, 0.0
      %617 = vadd.xlane.f32.xlu0 %v616
      %v618 = vpop.xlane.xlu0 %617
      %v619 = vsel %vm606, %v578, 0.0
      %620 = vadd.xlane.f32.xlu0 %v619
      %v621 = vpop.xlane.xlu0 %620
      %v622 = vsel %vm606, %v579, 0.0
      %623 = vadd.xlane.f32.xlu0 %v622
      %v624 = vpop.xlane.xlu0 %623
      %v625 = vsel %vm606, %v580, 0.0
      %626 = vadd.xlane.f32.xlu0 %v625
      %v627 = vpop.xlane.xlu0 %626
      %v628 = vsel %vm606, %v581, 0.0
      %629 = vadd.xlane.f32.xlu0 %v628
      %v630 = vpop.xlane.xlu0 %629
      %v631 = vsel %vm606, %v582, 0.0
      %632 = vadd.xlane.f32.xlu0 %v631
      %v633 = vpop.xlane.xlu0 %632
      %v634 = vsel %vm606, %v583, 0.0
      %635 = vadd.xlane.f32.xlu0 %v634
      %v636 = vpop.xlane.xlu0 %635
      %v637 = vsel %vm606, %v584, 0.0
      %638 = vadd.xlane.f32.xlu0 %v637
      %v639 = vpop.xlane.xlu0 %638
      %v640 = vsel %vm606, %v585, 0.0
      %641 = vadd.xlane.f32.xlu0 %v640
      %v642 = vpop.xlane.xlu0 %641
      %v643 = vsel %vm606, %v586, 0.0
      %644 = vadd.xlane.f32.xlu0 %v643
      %v645 = vpop.xlane.xlu0 %644
      %v646 = vsel %vm606, %v587, 0.0
      %647 = vadd.xlane.f32.xlu0 %v646
      %v648 = vpop.xlane.xlu0 %647
      %v649 = vsel %vm606, %v588, 0.0
      %650 = vadd.xlane.f32.xlu0 %v649
      %v651 = vpop.xlane.xlu0 %650
      %v652 = vsel %vm606, %v589, 0.0
      %653 = vadd.xlane.f32.xlu0 %v652
      %v654 = vpop.xlane.xlu0 %653
      %v655 = vsel %vm606, %v590, 0.0
      %656 = vadd.xlane.f32.xlu0 %v655
      %v657 = vpop.xlane.xlu0 %656
      %v658 = vsel %vm606, %v591, 0.0
      %659 = vadd.xlane.f32.xlu0 %v658
      %v660 = vpop.xlane.xlu0 %659
      %v661 = vsel %vm606, %v592, 0.0
      %662 = vadd.xlane.f32.xlu0 %v661
      %v663 = vpop.xlane.xlu0 %662
      %v664 = vsel %vm606, %v593, 0.0
      %665 = vadd.xlane.f32.xlu0 %v664
      %v666 = vpop.xlane.xlu0 %665
      %v667 = vsel %vm606, %v594, 0.0
      %668 = vadd.xlane.f32.xlu0 %v667
      %v669 = vpop.xlane.xlu0 %668
      %v670 = vsel %vm606, %v595, 0.0
      %671 = vadd.xlane.f32.xlu0 %v670
      %v672 = vpop.xlane.xlu0 %671
      %v673 = vsel %vm606, %v596, 0.0
      %674 = vadd.xlane.f32.xlu0 %v673
      %v675 = vpop.xlane.xlu0 %674
      %v676 = vsel %vm606, %v597, 0.0
      %677 = vadd.xlane.f32.xlu0 %v676
      %v678 = vpop.xlane.xlu0 %677
      %v679 = vsel %vm606, %v598, 0.0
      %680 = vadd.xlane.f32.xlu0 %v679
      %v681 = vpop.xlane.xlu0 %680
      %v682 = vsel %vm606, %v599, 0.0
      %683 = vadd.xlane.f32.xlu0 %v682
      %v684 = vpop.xlane.xlu0 %683
      %v685 = vsel %vm606, %v600, 0.0
      %686 = vadd.xlane.f32.xlu0 %v685
      %v687 = vpop.xlane.xlu0 %686
      %v688 = vsel %vm606, %v601, 0.0
      %689 = vadd.xlane.f32.xlu0 %v688
      %v690 = vpop.xlane.xlu0 %689
      %v691 = vsel %vm606, %v602, 0.0
      %692 = vadd.xlane.f32.xlu0 %v691
      %v693 = vpop.xlane.xlu0 %692
      %v694 = vsel %vm606, %v603, 0.0
      %695 = vadd.xlane.f32.xlu0 %v694
      %v696 = vpop.xlane.xlu0 %695
      %v697 = vsel %vm606, %v604, 0.0
      %698 = vadd.xlane.f32.xlu0 %v697
      %v699 = vpop.xlane.xlu0 %698
      %v700 = vsel %vm606, %v605, 0.0
      %701 = vadd.xlane.f32.xlu0 %v700
      %v702 = vpop.xlane.xlu0 %701
      %v703 = vrsqrt.pop %v609
      %v704 = vmul.f32 %v609, %v703
      %vm705 = vcmp.eq.f32.partialorder %v609, inf
      %v706 = vsel %vm705, %v609, %v704
      %vm707 = vcmp.eq.f32.partialorder %v609, 0.0
      %v708 = vand.u32 %v609, 2147483648
      %v709 = vsel %vm707, %v708, %v706
      %v710 = vrsqrt.pop %v612
      %v711 = vmul.f32 %v612, %v710
      %vm712 = vcmp.eq.f32.partialorder %v612, inf
      %v713 = vsel %vm712, %v612, %v711
      %vm714 = vcmp.eq.f32.partialorder %v612, 0.0
      %v715 = vand.u32 %v612, 2147483648
      %v716 = vsel %vm714, %v715, %v713
      %v717 = vrsqrt.pop %v615
      %v718 = vmul.f32 %v615, %v717
      %vm719 = vcmp.eq.f32.partialorder %v615, inf
      %v720 = vsel %vm719, %v615, %v718
      %vm721 = vcmp.eq.f32.partialorder %v615, 0.0
      %v722 = vand.u32 %v615, 2147483648
      %v723 = vsel %vm721, %v722, %v720
      %v724 = vrsqrt.pop %v618
      %v725 = vmul.f32 %v618, %v724
      %vm726 = vcmp.eq.f32.partialorder %v618, inf
      %v727 = vsel %vm726, %v618, %v725
      %vm728 = vcmp.eq.f32.partialorder %v618, 0.0
      %v729 = vand.u32 %v618, 2147483648
      %v730 = vsel %vm728, %v729, %v727
      %v731 = vrsqrt.pop %v621
      %v732 = vmul.f32 %v621, %v731
      %vm733 = vcmp.eq.f32.partialorder %v621, inf
      %v734 = vsel %vm733, %v621, %v732
      %vm735 = vcmp.eq.f32.partialorder %v621, 0.0
      %v736 = vand.u32 %v621, 2147483648
      %v737 = vsel %vm735, %v736, %v734
      %v738 = vrsqrt.pop %v624
      %v739 = vmul.f32 %v624, %v738
      %vm740 = vcmp.eq.f32.partialorder %v624, inf
      %v741 = vsel %vm740, %v624, %v739
      %vm742 = vcmp.eq.f32.partialorder %v624, 0.0
      %v743 = vand.u32 %v624, 2147483648
      %v744 = vsel %vm742, %v743, %v741
      %v745 = vrsqrt.pop %v627
      %v746 = vmul.f32 %v627, %v745
      %vm747 = vcmp.eq.f32.partialorder %v627, inf
      %v748 = vsel %vm747, %v627, %v746
      %vm749 = vcmp.eq.f32.partialorder %v627, 0.0
      %v750 = vand.u32 %v627, 2147483648
      %v751 = vsel %vm749, %v750, %v748
      %v752 = vrsqrt.pop %v630
      %v753 = vmul.f32 %v630, %v752
      %vm754 = vcmp.eq.f32.partialorder %v630, inf
      %v755 = vsel %vm754, %v630, %v753
      %vm756 = vcmp.eq.f32.partialorder %v630, 0.0
      %v757 = vand.u32 %v630, 2147483648
      %v758 = vsel %vm756, %v757, %v755
      %v759 = vrsqrt.pop %v633
      %v760 = vmul.f32 %v633, %v759
      %vm761 = vcmp.eq.f32.partialorder %v633, inf
      %v762 = vsel %vm761, %v633, %v760
      %vm763 = vcmp.eq.f32.partialorder %v633, 0.0
      %v764 = vand.u32 %v633, 2147483648
      %v765 = vsel %vm763, %v764, %v762
      %v766 = vrsqrt.pop %v636
      %v767 = vmul.f32 %v636, %v766
      %vm768 = vcmp.eq.f32.partialorder %v636, inf
      %v769 = vsel %vm768, %v636, %v767
      %vm770 = vcmp.eq.f32.partialorder %v636, 0.0
      %v771 = vand.u32 %v636, 2147483648
      %v772 = vsel %vm770, %v771, %v769
      %v773 = vrsqrt.pop %v639
      %v774 = vmul.f32 %v639, %v773
      %vm775 = vcmp.eq.f32.partialorder %v639, inf
      %v776 = vsel %vm775, %v639, %v774
      %vm777 = vcmp.eq.f32.partialorder %v639, 0.0
      %v778 = vand.u32 %v639, 2147483648
      %v779 = vsel %vm777, %v778, %v776
      %v780 = vrsqrt.pop %v642
      %v781 = vmul.f32 %v642, %v780
      %vm782 = vcmp.eq.f32.partialorder %v642, inf
      %v783 = vsel %vm782, %v642, %v781
      %vm784 = vcmp.eq.f32.partialorder %v642, 0.0
      %v785 = vand.u32 %v642, 2147483648
      %v786 = vsel %vm784, %v785, %v783
      %v787 = vrsqrt.pop %v645
      %v788 = vmul.f32 %v645, %v787
      %vm789 = vcmp.eq.f32.partialorder %v645, inf
      %v790 = vsel %vm789, %v645, %v788
      %vm791 = vcmp.eq.f32.partialorder %v645, 0.0
      %v792 = vand.u32 %v645, 2147483648
      %v793 = vsel %vm791, %v792, %v790
      %v794 = vrsqrt.pop %v648
      %v795 = vmul.f32 %v648, %v794
      %vm796 = vcmp.eq.f32.partialorder %v648, inf
      %v797 = vsel %vm796, %v648, %v795
      %vm798 = vcmp.eq.f32.partialorder %v648, 0.0
      %v799 = vand.u32 %v648, 2147483648
      %v800 = vsel %vm798, %v799, %v797
      %v801 = vrsqrt.pop %v651
      %v802 = vmul.f32 %v651, %v801
      %vm803 = vcmp.eq.f32.partialorder %v651, inf
      %v804 = vsel %vm803, %v651, %v802
      %vm805 = vcmp.eq.f32.partialorder %v651, 0.0
      %v806 = vand.u32 %v651, 2147483648
      %v807 = vsel %vm805, %v806, %v804
      %v808 = vrsqrt.pop %v654
      %v809 = vmul.f32 %v654, %v808
      %vm810 = vcmp.eq.f32.partialorder %v654, inf
      %v811 = vsel %vm810, %v654, %v809
      %vm812 = vcmp.eq.f32.partialorder %v654, 0.0
      %v813 = vand.u32 %v654, 2147483648
      %v814 = vsel %vm812, %v813, %v811
      %v815 = vrsqrt.pop %v657
      %v816 = vmul.f32 %v657, %v815
      %vm817 = vcmp.eq.f32.partialorder %v657, inf
      %v818 = vsel %vm817, %v657, %v816
      %vm819 = vcmp.eq.f32.partialorder %v657, 0.0
      %v820 = vand.u32 %v657, 2147483648
      %v821 = vsel %vm819, %v820, %v818
      %v822 = vrsqrt.pop %v660
      %v823 = vmul.f32 %v660, %v822
      %vm824 = vcmp.eq.f32.partialorder %v660, inf
      %v825 = vsel %vm824, %v660, %v823
      %vm826 = vcmp.eq.f32.partialorder %v660, 0.0
      %v827 = vand.u32 %v660, 2147483648
      %v828 = vsel %vm826, %v827, %v825
      %v829 = vrsqrt.pop %v663
      %v830 = vmul.f32 %v663, %v829
      %vm831 = vcmp.eq.f32.partialorder %v663, inf
      %v832 = vsel %vm831, %v663, %v830
      %vm833 = vcmp.eq.f32.partialorder %v663, 0.0
      %v834 = vand.u32 %v663, 2147483648
      %v835 = vsel %vm833, %v834, %v832
      %v836 = vrsqrt.pop %v666
      %v837 = vmul.f32 %v666, %v836
      %vm838 = vcmp.eq.f32.partialorder %v666, inf
      %v839 = vsel %vm838, %v666, %v837
      %vm840 = vcmp.eq.f32.partialorder %v666, 0.0
      %v841 = vand.u32 %v666, 2147483648
      %v842 = vsel %vm840, %v841, %v839
      %v843 = vrsqrt.pop %v669
      %v844 = vmul.f32 %v669, %v843
      %vm845 = vcmp.eq.f32.partialorder %v669, inf
      %v846 = vsel %vm845, %v669, %v844
      %vm847 = vcmp.eq.f32.partialorder %v669, 0.0
      %v848 = vand.u32 %v669, 2147483648
      %v849 = vsel %vm847, %v848, %v846
      %v850 = vrsqrt.pop %v672
      %v851 = vmul.f32 %v672, %v850
      %vm852 = vcmp.eq.f32.partialorder %v672, inf
      %v853 = vsel %vm852, %v672, %v851
      %vm854 = vcmp.eq.f32.partialorder %v672, 0.0
      %v855 = vand.u32 %v672, 2147483648
      %v856 = vsel %vm854, %v855, %v853
      %v857 = vrsqrt.pop %v675
      %v858 = vmul.f32 %v675, %v857
      %vm859 = vcmp.eq.f32.partialorder %v675, inf
      %v860 = vsel %vm859, %v675, %v858
      %vm861 = vcmp.eq.f32.partialorder %v675, 0.0
      %v862 = vand.u32 %v675, 2147483648
      %v863 = vsel %vm861, %v862, %v860
      %v864 = vrsqrt.pop %v678
      %v865 = vmul.f32 %v678, %v864
      %vm866 = vcmp.eq.f32.partialorder %v678, inf
      %v867 = vsel %vm866, %v678, %v865
      %vm868 = vcmp.eq.f32.partialorder %v678, 0.0
      %v869 = vand.u32 %v678, 2147483648
      %v870 = vsel %vm868, %v869, %v867
      %v871 = vrsqrt.pop %v681
      %v872 = vmul.f32 %v681, %v871
      %vm873 = vcmp.eq.f32.partialorder %v681, inf
      %v874 = vsel %vm873, %v681, %v872
      %vm875 = vcmp.eq.f32.partialorder %v681, 0.0
      %v876 = vand.u32 %v681, 2147483648
      %v877 = vsel %vm875, %v876, %v874
      %v878 = vrsqrt.pop %v684
      %v879 = vmul.f32 %v684, %v878
      %vm880 = vcmp.eq.f32.partialorder %v684, inf
      %v881 = vsel %vm880, %v684, %v879
      %vm882 = vcmp.eq.f32.partialorder %v684, 0.0
      %v883 = vand.u32 %v684, 2147483648
      %v884 = vsel %vm882, %v883, %v881
      %v885 = vrsqrt.pop %v687
      %v886 = vmul.f32 %v687, %v885
      %vm887 = vcmp.eq.f32.partialorder %v687, inf
      %v888 = vsel %vm887, %v687, %v886
      %vm889 = vcmp.eq.f32.partialorder %v687, 0.0
      %v890 = vand.u32 %v687, 2147483648
      %v891 = vsel %vm889, %v890, %v888
      %v892 = vrsqrt.pop %v690
      %v893 = vmul.f32 %v690, %v892
      %vm894 = vcmp.eq.f32.partialorder %v690, inf
      %v895 = vsel %vm894, %v690, %v893
      %vm896 = vcmp.eq.f32.partialorder %v690, 0.0
      %v897 = vand.u32 %v690, 2147483648
      %v898 = vsel %vm896, %v897, %v895
      %v899 = vrsqrt.pop %v693
      %v900 = vmul.f32 %v693, %v899
      %vm901 = vcmp.eq.f32.partialorder %v693, inf
      %v902 = vsel %vm901, %v693, %v900
      %vm903 = vcmp.eq.f32.partialorder %v693, 0.0
      %v904 = vand.u32 %v693, 2147483648
      %v905 = vsel %vm903, %v904, %v902
      %v906 = vrsqrt.pop %v696
      %v907 = vmul.f32 %v696, %v906
      %vm908 = vcmp.eq.f32.partialorder %v696, inf
      %v909 = vsel %vm908, %v696, %v907
      %vm910 = vcmp.eq.f32.partialorder %v696, 0.0
      %v911 = vand.u32 %v696, 2147483648
      %v912 = vsel %vm910, %v911, %v909
      %v913 = vrsqrt.pop %v699
      %v914 = vmul.f32 %v699, %v913
      %vm915 = vcmp.eq.f32.partialorder %v699, inf
      %v916 = vsel %vm915, %v699, %v914
      %vm917 = vcmp.eq.f32.partialorder %v699, 0.0
      %v918 = vand.u32 %v699, 2147483648
      %v919 = vsel %vm917, %v918, %v916
      %v920 = vrsqrt.pop %v702
      %v921 = vmul.f32 %v702, %v920
      %vm922 = vcmp.eq.f32.partialorder %v702, inf
      %v923 = vsel %vm922, %v702, %v921
      %vm924 = vcmp.eq.f32.partialorder %v702, 0.0
      %v925 = vand.u32 %v702, 2147483648
      %v926 = vsel %vm924, %v925, %v923
      %v927 = vadd.f32 %v709, 1e-08
      %v928 = vadd.f32 %v716, 1e-08
      %v929 = vadd.f32 %v723, 1e-08
      %v930 = vadd.f32 %v730, 1e-08
      %v931 = vadd.f32 %v737, 1e-08
      %v932 = vadd.f32 %v744, 1e-08
      %v933 = vadd.f32 %v751, 1e-08
      %v934 = vadd.f32 %v758, 1e-08
      %v935 = vadd.f32 %v765, 1e-08
      %v936 = vadd.f32 %v772, 1e-08
      %v937 = vadd.f32 %v779, 1e-08
      %v938 = vadd.f32 %v786, 1e-08
      %v939 = vadd.f32 %v793, 1e-08
      %v940 = vadd.f32 %v800, 1e-08
      %v941 = vadd.f32 %v807, 1e-08
      %v942 = vadd.f32 %v814, 1e-08
      %v943 = vadd.f32 %v821, 1e-08
      %v944 = vadd.f32 %v828, 1e-08
      %v945 = vadd.f32 %v835, 1e-08
      %v946 = vadd.f32 %v842, 1e-08
      %v947 = vadd.f32 %v849, 1e-08
      %v948 = vadd.f32 %v856, 1e-08
      %v949 = vadd.f32 %v863, 1e-08
      %v950 = vadd.f32 %v870, 1e-08
      %v951 = vadd.f32 %v877, 1e-08
      %v952 = vadd.f32 %v884, 1e-08
      %v953 = vadd.f32 %v891, 1e-08
      %v954 = vadd.f32 %v898, 1e-08
      %v955 = vadd.f32 %v905, 1e-08
      %v956 = vadd.f32 %v912, 1e-08
      %v957 = vadd.f32 %v919, 1e-08
      %v958 = vadd.f32 %v926, 1e-08
      %v959 = vrcp.pop %v927
      %v960 = vrcp.pop %v928
      %v961 = vrcp.pop %v929
      %v962 = vrcp.pop %v930
      %v963 = vrcp.pop %v931
      %v964 = vrcp.pop %v932
      %v965 = vrcp.pop %v933
      %v966 = vrcp.pop %v934
      %v967 = vrcp.pop %v935
      %v968 = vrcp.pop %v936
      %v969 = vrcp.pop %v937
      %v970 = vrcp.pop %v938
      %v971 = vrcp.pop %v939
      %v972 = vrcp.pop %v940
      %v973 = vrcp.pop %v941
      %v974 = vrcp.pop %v942
      %v975 = vrcp.pop %v943
      %v976 = vrcp.pop %v944
      %v977 = vrcp.pop %v945
      %v978 = vrcp.pop %v946
      %v979 = vrcp.pop %v947
      %v980 = vrcp.pop %v948
      %v981 = vrcp.pop %v949
      %v982 = vrcp.pop %v950
      %v983 = vrcp.pop %v951
      %v984 = vrcp.pop %v952
      %v985 = vrcp.pop %v953
      %v986 = vrcp.pop %v954
      %v987 = vrcp.pop %v955
      %v988 = vrcp.pop %v956
      %v989 = vrcp.pop %v957
      %v990 = vrcp.pop %v958
      %v991 = vmul.f32 %v959, 2.828427
      %v992 = vmul.f32 %v960, 2.828427
      %v993 = vmul.f32 %v961, 2.828427
      %v994 = vmul.f32 %v962, 2.828427
      %v995 = vmul.f32 %v963, 2.828427
      %v996 = vmul.f32 %v964, 2.828427
      %v997 = vmul.f32 %v965, 2.828427
      %v998 = vmul.f32 %v966, 2.828427
      %v999 = vmul.f32 %v967, 2.828427
      %v1000 = vmul.f32 %v968, 2.828427
      %v1001 = vmul.f32 %v969, 2.828427
      %v1002 = vmul.f32 %v970, 2.828427
      %v1003 = vmul.f32 %v971, 2.828427
      %v1004 = vmul.f32 %v972, 2.828427
      %v1005 = vmul.f32 %v973, 2.828427
      %v1006 = vmul.f32 %v974, 2.828427
      %v1007 = vmul.f32 %v975, 2.828427
      %v1008 = vmul.f32 %v976, 2.828427
      %v1009 = vmul.f32 %v977, 2.828427
      %v1010 = vmul.f32 %v978, 2.828427
      %v1011 = vmul.f32 %v979, 2.828427
      %v1012 = vmul.f32 %v980, 2.828427
      %v1013 = vmul.f32 %v981, 2.828427
      %v1014 = vmul.f32 %v982, 2.828427
      %v1015 = vmul.f32 %v983, 2.828427
      %v1016 = vmul.f32 %v984, 2.828427
      %v1017 = vmul.f32 %v985, 2.828427
      %v1018 = vmul.f32 %v986, 2.828427
      %v1019 = vmul.f32 %v987, 2.828427
      %v1020 = vmul.f32 %v988, 2.828427
      %v1021 = vmul.f32 %v989, 2.828427
      %v1022 = vmul.f32 %v990, 2.828427
      %v1023 = vmul.f32 %v542, %v991
      %v1024 = vmul.f32 %v543, %v992
      %v1025 = vmul.f32 %v544, %v993
      %v1026 = vmul.f32 %v545, %v994
      %v1027 = vmul.f32 %v546, %v995
      %v1028 = vmul.f32 %v547, %v996
      %v1029 = vmul.f32 %v548, %v997
      %v1030 = vmul.f32 %v549, %v998
      %v1031 = vmul.f32 %v550, %v999
      %v1032 = vmul.f32 %v551, %v1000
      %v1033 = vmul.f32 %v552, %v1001
      %v1034 = vmul.f32 %v553, %v1002
      %v1035 = vmul.f32 %v554, %v1003
      %v1036 = vmul.f32 %v555, %v1004
      %v1037 = vmul.f32 %v556, %v1005
      %v1038 = vmul.f32 %v557, %v1006
      %v1039 = vmul.f32 %v558, %v1007
      %v1040 = vmul.f32 %v559, %v1008
      %v1041 = vmul.f32 %v560, %v1009
      %v1042 = vmul.f32 %v561, %v1010
      %v1043 = vmul.f32 %v562, %v1011
      %v1044 = vmul.f32 %v563, %v1012
      %v1045 = vmul.f32 %v564, %v1013
      %v1046 = vmul.f32 %v565, %v1014
      %v1047 = vmul.f32 %v566, %v1015
      %v1048 = vmul.f32 %v567, %v1016
      %v1049 = vmul.f32 %v568, %v1017
      %v1050 = vmul.f32 %v569, %v1018
      %v1051 = vmul.f32 %v570, %v1019
      %v1052 = vmul.f32 %v571, %v1020
      %v1053 = vmul.f32 %v572, %v1021
      %v1054 = vmul.f32 %v573, %v1022
      %1055 = vst.msk [vmem:[%s145] sm:$0xff] %vm606, %v1023
      %1056 = vst.msk [vmem:[%s145 + $0x8] sm:$0xff] %vm606, %v1024
      %1057 = vst.msk [vmem:[%s145 + $0x10] sm:$0xff] %vm606, %v1025
      %1058 = vst.msk [vmem:[%s145 + $0x18] sm:$0xff] %vm606, %v1026
      %1059 = vst.msk [vmem:[%s145 + $0x20] sm:$0xff] %vm606, %v1027
      %1060 = vst.msk [vmem:[%s145 + $0x28] sm:$0xff] %vm606, %v1028
      %1061 = vst.msk [vmem:[%s145 + $0x30] sm:$0xff] %vm606, %v1029
      %1062 = vst.msk [vmem:[%s145 + $0x38] sm:$0xff] %vm606, %v1030
      %1063 = vst.msk [vmem:[%s145 + $0x40] sm:$0xff] %vm606, %v1031
      %1064 = vst.msk [vmem:[%s145 + $0x48] sm:$0xff] %vm606, %v1032
      %1065 = vst.msk [vmem:[%s145 + $0x50] sm:$0xff] %vm606, %v1033
      %1066 = vst.msk [vmem:[%s145 + $0x58] sm:$0xff] %vm606, %v1034
      %1067 = vst.msk [vmem:[%s145 + $0x60] sm:$0xff] %vm606, %v1035
      %1068 = vst.msk [vmem:[%s145 + $0x68] sm:$0xff] %vm606, %v1036
      %1069 = vst.msk [vmem:[%s145 + $0x70] sm:$0xff] %vm606, %v1037
      %1070 = vst.msk [vmem:[%s145 + $0x78] sm:$0xff] %vm606, %v1038
      %1071 = vst.msk [vmem:[%s145 + $0x80] sm:$0xff] %vm606, %v1039
      %1072 = vst.msk [vmem:[%s145 + $0x88] sm:$0xff] %vm606, %v1040
      %1073 = vst.msk [vmem:[%s145 + $0x90] sm:$0xff] %vm606, %v1041
      %1074 = vst.msk [vmem:[%s145 + $0x98] sm:$0xff] %vm606, %v1042
      %1075 = vst.msk [vmem:[%s145 + $0xa0] sm:$0xff] %vm606, %v1043
      %1076 = vst.msk [vmem:[%s145 + $0xa8] sm:$0xff] %vm606, %v1044
      %1077 = vst.msk [vmem:[%s145 + $0xb0] sm:$0xff] %vm606, %v1045
      %1078 = vst.msk [vmem:[%s145 + $0xb8] sm:$0xff] %vm606, %v1046
      %1079 = vst.msk [vmem:[%s145 + $0xc0] sm:$0xff] %vm606, %v1047
      %1080 = vst.msk [vmem:[%s145 + $0xc8] sm:$0xff] %vm606, %v1048
      %1081 = vst.msk [vmem:[%s145 + $0xd0] sm:$0xff] %vm606, %v1049
      %1082 = vst.msk [vmem:[%s145 + $0xd8] sm:$0xff] %vm606, %v1050
      %1083 = vst.msk [vmem:[%s145 + $0xe0] sm:$0xff] %vm606, %v1051
      %1084 = vst.msk [vmem:[%s145 + $0xe8] sm:$0xff] %vm606, %v1052
      %1085 = vst.msk [vmem:[%s145 + $0xf0] sm:$0xff] %vm606, %v1053
      %1086 = vst.msk [vmem:[%s145 + $0xf8] sm:$0xff] %vm606, %v1054
      %s1087 = smul.u32 32, %s13
      %p1088 = scmp.lt.s32.totalorder %s1087, 63
      %s1089 = scalar_select %p1088, %s1087, 63
      %s1090 = smul.addr %s1089, 8
      %s1091 = scalar_lea.vmem %s2, %s1090
      // Predicated region
      $region29: #{_net_e_forward.4} parent=27 // pred_check
        %p1092 = pneg %p78
      $region30: #{_net_e_forward.4} parent=27 // pred_check_branch
        %1094 = sbr.rel (%p1092) target = $region32
      $region31: #{_net_e_forward.4} parent=27 // pred_region
        %s1095 = smul.u32 32, %s13
      $region32: #{_net_e_forward.4} parent=27 // pred_fallthru
        _
    $region28: #{_net_e_forward.4} parent=5 // pred_fallthru
      _
    %p1096 = scmp.le.s32.totalorder 2, %s8
    // Predicated region
    $region33: #{_net_e_forward.4} parent=5 // pred_check
      %p1097 = pneg %p1096
    $region34: #{_net_e_forward.4} parent=5 // pred_check_branch
      %1099 = sbr.rel (%p1097) target = $region36
    $region35: #{_net_e_forward.4} parent=5 // pred_region
      %s1100 = ssub.s32 %s8, 2
      // Predicated region
      $region37: #{_net_e_forward.4} parent=35 // pred_check
        %p1101 = pneg %p84
      $region38: #{_net_e_forward.4} parent=35 // pred_check_branch
        %1103 = sbr.rel (%p1101) target = $region40
      $region39: #{_net_e_forward.4} parent=35 // pred_region
        %s1104 = smul.u32 32, %s14
        %p1105 = scmp.lt.s32.totalorder %s1104, 63
        %s1106 = scalar_select %p1105, %s1104, 63
        %s1107 = smul.addr %s1106, 8
        %s1108 = scalar_lea.vmem %s2, %s1107
      $region40: #{_net_e_forward.4} parent=35 // pred_fallthru
        _
    $region36: #{_net_e_forward.4} parent=5 // pred_fallthru
      _
  $region6: #{_net_e_forward.4} parent=0 // loop_footer
    %s12 = sadd.s32 1, %s8
  $region7: #{_net_e_forward.4} parent=0 // loop_footer_branch
    %7 = sbr.rel target = $region3
  $region8: #{_net_e_forward.4} parent=0 // loop_exit
    _

// kernel: _net_e_forward.5
$region0: #{_net_e_forward.5}
  #allocation0 [shape = 'u32[]', space=smem, size = 0x4, offset = 0x4, fixed_abs, tag = 'smem constant byte address 0x4 - core index']
  #allocation1 [shape = 'u32[144,128]{1,0:T(1,128)}', space=vmem, size = 0x12000, scoped, tag = 'internal scratch']
  %s0 = inlined_call_operand.vmem [shape: f32[128,72], index: 0, kind: input, shape index: {}]
  %s1 = inlined_call_operand.vmem [shape: f32[72,16], index: 1, kind: input, shape index: {}]
  %s2 = inlined_call_operand.vmem [shape: f32[128,16], index: 2, kind: output, shape index: {}]
  %s3 = sld [smem:[#allocation0]]
  $region18: #{_net_e_forward.5} parent=0
    _
  %s5 = ssub.s32 1, %s3
  %s6 = scalar_select 0, %s5, %s3
  // Predicated region
  $region2: #{_net_e_forward.5} parent=0 // pred_check
    _
  $region3: #{_net_e_forward.5} parent=0 // pred_check_branch
    %8 = sbr.rel (0) target = $region5
  $region4: #{_net_e_forward.5} parent=0 // pred_region
    _
  $region5: #{_net_e_forward.5} parent=0 // pred_fallthru
    _
  // Predicated region
  $region6: #{_net_e_forward.5} parent=0 // pred_check
    _
  $region7: #{_net_e_forward.5} parent=0 // pred_check_branch
    %10 = sbr.rel (0) target = $region9
  $region8: #{_net_e_forward.5} parent=0 // pred_region
    _
  $region9: #{_net_e_forward.5} parent=0 // pred_fallthru
    _
  %v11 = vld [vmem:[%s0] sm:$0xff]
  %v12 = vld [vmem:[%s0 + $0x8] sm:$0xff]
  %v13 = vld [vmem:[%s0 + $0x10] sm:$0xff]
  %v14 = vld [vmem:[%s0 + $0x18] sm:$0xff]
  %v15 = vld [vmem:[%s0 + $0x20] sm:$0xff]
  %v16 = vld [vmem:[%s0 + $0x28] sm:$0xff]
  %v17 = vld [vmem:[%s0 + $0x30] sm:$0xff]
  %v18 = vld [vmem:[%s0 + $0x38] sm:$0xff]
  %v19 = vld [vmem:[%s0 + $0x40] sm:$0xff]
  %v20 = vld [vmem:[%s0 + $0x48] sm:$0xff]
  %v21 = vld [vmem:[%s0 + $0x50] sm:$0xff]
  %v22 = vld [vmem:[%s0 + $0x58] sm:$0xff]
  %v23 = vld [vmem:[%s0 + $0x60] sm:$0xff]
  %v24 = vld [vmem:[%s0 + $0x68] sm:$0xff]
  %v25 = vld [vmem:[%s0 + $0x70] sm:$0xff]
  %v26 = vld [vmem:[%s0 + $0x78] sm:$0xff]
  %v27 = vld [vmem:[%s1] sm:$0xff]
  %v28 = vld [vmem:[%s1 + $0x8] sm:$0xff]
  %v29 = vld [vmem:[%s1 + $0x10] sm:$0xff]
  %v30 = vld [vmem:[%s1 + $0x18] sm:$0xff]
  %v31 = vld [vmem:[%s1 + $0x20] sm:$0xff]
  %v32 = vld [vmem:[%s1 + $0x28] sm:$0xff]
  %v33 = vld [vmem:[%s1 + $0x30] sm:$0xff]
  %v34 = vld [vmem:[%s1 + $0x38] sm:$0xff]
  %v35 = vld [vmem:[%s1 + $0x40] sm:$0xff]
  %vm36 = vcmask 588800
  %v38 = vsel %vm36, %v11, 0
  %v41 = vsel %vm36, %v12, 0
  %v44 = vsel %vm36, %v13, 0
  %v47 = vsel %vm36, %v14, 0
  %v50 = vsel %vm36, %v15, 0
  %v53 = vsel %vm36, %v16, 0
  %v56 = vsel %vm36, %v17, 0
  %v59 = vsel %vm36, %v18, 0
  %v62 = vsel %vm36, %v19, 0
  %v65 = vsel %vm36, %v20, 0
  %v68 = vsel %vm36, %v21, 0
  %v71 = vsel %vm36, %v22, 0
  %v74 = vsel %vm36, %v23, 0
  %v77 = vsel %vm36, %v24, 0
  %v80 = vsel %vm36, %v25, 0
  %v83 = vsel %vm36, %v26, 0
  %85 = vmatprep.subr.mxu0 0.0
  %86 = vmatpush1.msra.mxu0 0.0
  %87 = vmatprep.subr.mxu0 0.0
  %88 = vmatpush1.msra.mxu0 0.0
  %89 = vmatprep.subr.mxu0 0.0
  %90 = vmatpush1.msra.mxu0 0.0
  %91 = vmatprep.subr.mxu0 0.0
  %92 = vmatpush1.msra.mxu0 0.0
  %93 = vmatprep.subr.mxu0 0.0
  %94 = vmatpush1.msra.mxu0 0.0
  %95 = vmatprep.subr.mxu0 0.0
  %96 = vmatpush1.msra.mxu0 0.0
  %97 = vmatprep.subr.mxu0 0.0
  %98 = vmatpush1.msra.mxu0 0.0
  %99 = vmatprep.subr.mxu0 0.0
  %100 = vmatpush1.msra.mxu0 %v35
  %101 = vmatprep.subr.mxu0 0.0
  %102 = vmatpush1.msra.mxu0 %v34
  %103 = vmatprep.subr.mxu0 0.0
  %104 = vmatpush1.msra.mxu0 %v33
  %105 = vmatprep.subr.mxu0 0.0
  %106 = vmatpush1.msra.mxu0 %v32
  %107 = vmatprep.subr.mxu0 0.0
  %108 = vmatpush1.msra.mxu0 %v31
  %109 = vmatprep.subr.mxu0 0.0
  %110 = vmatpush1.msra.mxu0 %v30
  %111 = vmatprep.subr.mxu0 0.0
  %112 = vmatpush1.msra.mxu0 %v29
  %113 = vmatprep.subr.mxu0 0.0
  %114 = vmatpush1.msra.mxu0 %v28
  %115 = vmatprep.subr.mxu0 0.0
  %116 = vmatpush1.msra.mxu0 %v27
  %117 = vmatprep.subr.mxu0 0.0
  %118 = vmatpush2.msra.mxu0 0.0
  %119 = vmatprep.subr.mxu0 0.0
  %120 = vmatpush2.msra.mxu0 0.0
  %121 = vmatprep.subr.mxu0 0.0
  %122 = vmatpush2.msra.mxu0 0.0
  %123 = vmatprep.subr.mxu0 0.0
  %124 = vmatpush2.msra.mxu0 0.0
  %125 = vmatprep.subr.mxu0 0.0
  %126 = vmatpush2.msra.mxu0 0.0
  %127 = vmatprep.subr.mxu0 0.0
  %128 = vmatpush2.msra.mxu0 0.0
  %129 = vmatprep.subr.mxu0 0.0
  %130 = vmatpush2.msra.mxu0 0.0
  %131 = vmatprep.subr.mxu0 0.0
  %132 = vmatpush2.msra.mxu0 0.0
  %133 = vmatprep.subr.mxu0 0.0
  %134 = vmatpush2.msra.mxu0 0.0
  %135 = vmatprep.subr.mxu0 0.0
  %136 = vmatpush2.msra.mxu0 0.0
  %137 = vmatprep.subr.mxu0 0.0
  %138 = vmatpush2.msra.mxu0 0.0
  %139 = vmatprep.subr.mxu0 0.0
  %140 = vmatpush2.msra.mxu0 0.0
  %141 = vmatprep.subr.mxu0 0.0
  %142 = vmatpush2.msra.mxu0 0.0
  %143 = vmatprep.subr.mxu0 0.0
  %144 = vmatpush2.msra.mxu0 0.0
  %145 = vmatprep.subr.mxu0 0.0
  %146 = vmatpush2.msra.mxu0 0.0
  %147 = vmatprep.subr.mxu0 0.0
  %148 = vmatpush2.msra.mxu0 0.0
  %149 = vmatprep.mubr.f32.mxu0 0.0
  %150 = vmatmul.mubr.f32.gmra.mxu0 %v38
  %v151 = vpop.f32.mrf.mxu0
  %v152 = vadd.f32 0.0, %v151
  %v153 = vpop.f32.mrf.mxu0
  %154 = vmatprep.mubr.f32.mxu0 0.0
  %155 = vmatmul.mubr.f32.gmra.mxu0 %v41
  %v156 = vpop.f32.mrf.mxu0
  %v157 = vadd.f32 0.0, %v156
  %v158 = vpop.f32.mrf.mxu0
  %159 = vmatprep.mubr.f32.mxu0 0.0
  %160 = vmatmul.mubr.f32.gmra.mxu0 %v44
  %v161 = vpop.f32.mrf.mxu0
  %v162 = vadd.f32 0.0, %v161
  %v163 = vpop.f32.mrf.mxu0
  %164 = vmatprep.mubr.f32.mxu0 0.0
  %165 = vmatmul.mubr.f32.gmra.mxu0 %v47
  %v166 = vpop.f32.mrf.mxu0
  %v167 = vadd.f32 0.0, %v166
  %v168 = vpop.f32.mrf.mxu0
  %169 = vmatprep.mubr.f32.mxu0 0.0
  %170 = vmatmul.mubr.f32.gmra.mxu0 %v50
  %v171 = vpop.f32.mrf.mxu0
  %v172 = vadd.f32 0.0, %v171
  %v173 = vpop.f32.mrf.mxu0
  %174 = vmatprep.mubr.f32.mxu0 0.0
  %175 = vmatmul.mubr.f32.gmra.mxu0 %v53
  %v176 = vpop.f32.mrf.mxu0
  %v177 = vadd.f32 0.0, %v176
  %v178 = vpop.f32.mrf.mxu0
  %179 = vmatprep.mubr.f32.mxu0 0.0
  %180 = vmatmul.mubr.f32.gmra.mxu0 %v56
  %v181 = vpop.f32.mrf.mxu0
  %v182 = vadd.f32 0.0, %v181
  %v183 = vpop.f32.mrf.mxu0
  %184 = vmatprep.mubr.f32.mxu0 0.0
  %185 = vmatmul.mubr.f32.gmra.mxu0 %v59
  %v186 = vpop.f32.mrf.mxu0
  %v187 = vadd.f32 0.0, %v186
  %v188 = vpop.f32.mrf.mxu0
  %189 = vmatprep.mubr.f32.mxu0 0.0
  %190 = vmatmul.mubr.f32.gmra.mxu0 %v62
  %v191 = vpop.f32.mrf.mxu0
  %v192 = vadd.f32 0.0, %v191
  %v193 = vpop.f32.mrf.mxu0
  %194 = vmatprep.mubr.f32.mxu0 0.0
  %195 = vmatmul.mubr.f32.gmra.mxu0 %v65
  %v196 = vpop.f32.mrf.mxu0
  %v197 = vadd.f32 0.0, %v196
  %v198 = vpop.f32.mrf.mxu0
  %199 = vmatprep.mubr.f32.mxu0 0.0
  %200 = vmatmul.mubr.f32.gmra.mxu0 %v68
  %v201 = vpop.f32.mrf.mxu0
  %v202 = vadd.f32 0.0, %v201
  %v203 = vpop.f32.mrf.mxu0
  %204 = vmatprep.mubr.f32.mxu0 0.0
  %205 = vmatmul.mubr.f32.gmra.mxu0 %v71
  %v206 = vpop.f32.mrf.mxu0
  %v207 = vadd.f32 0.0, %v206
  %v208 = vpop.f32.mrf.mxu0
  %209 = vmatprep.mubr.f32.mxu0 0.0
  %210 = vmatmul.mubr.f32.gmra.mxu0 %v74
  %v211 = vpop.f32.mrf.mxu0
  %v212 = vadd.f32 0.0, %v211
  %v213 = vpop.f32.mrf.mxu0
  %214 = vmatprep.mubr.f32.mxu0 0.0
  %215 = vmatmul.mubr.f32.gmra.mxu0 %v77
  %v216 = vpop.f32.mrf.mxu0
  %v217 = vadd.f32 0.0, %v216
  %v218 = vpop.f32.mrf.mxu0
  %219 = vmatprep.mubr.f32.mxu0 0.0
  %220 = vmatmul.mubr.f32.gmra.mxu0 %v80
  %v221 = vpop.f32.mrf.mxu0
  %v222 = vadd.f32 0.0, %v221
  %v223 = vpop.f32.mrf.mxu0
  %224 = vmatprep.mubr.f32.mxu0 0.0
  %225 = vmatmul.mubr.f32.gmra.mxu0 %v83
  %v226 = vpop.f32.mrf.mxu0
  %v227 = vadd.f32 0.0, %v226
  %v228 = vpop.f32.mrf.mxu0
  %229 = vdwg.mxu0
  %v230 = vmul.f32 %v152, 0.2
  %v231 = vmul.f32 %v157, 0.2
  %v232 = vmul.f32 %v162, 0.2
  %v233 = vmul.f32 %v167, 0.2
  %v234 = vmul.f32 %v172, 0.2
  %v235 = vmul.f32 %v177, 0.2
  %v236 = vmul.f32 %v182, 0.2
  %v237 = vmul.f32 %v187, 0.2
  %v238 = vmul.f32 %v192, 0.2
  %v239 = vmul.f32 %v197, 0.2
  %v240 = vmul.f32 %v202, 0.2
  %v241 = vmul.f32 %v207, 0.2
  %v242 = vmul.f32 %v212, 0.2
  %v243 = vmul.f32 %v217, 0.2
  %v244 = vmul.f32 %v222, 0.2
  %v245 = vmul.f32 %v227, 0.2
  %v246 = vmax.f32 %v152, %v230
  %v247 = vmax.f32 %v157, %v231
  %v248 = vmax.f32 %v162, %v232
  %v249 = vmax.f32 %v167, %v233
  %v250 = vmax.f32 %v172, %v234
  %v251 = vmax.f32 %v177, %v235
  %v252 = vmax.f32 %v182, %v236
  %v253 = vmax.f32 %v187, %v237
  %v254 = vmax.f32 %v192, %v238
  %v255 = vmax.f32 %v197, %v239
  %v256 = vmax.f32 %v202, %v240
  %v257 = vmax.f32 %v207, %v241
  %v258 = vmax.f32 %v212, %v242
  %v259 = vmax.f32 %v217, %v243
  %v260 = vmax.f32 %v222, %v244
  %v261 = vmax.f32 %v227, %v245
  %v262 = vmul.f32 %v246, %v246
  %v263 = vmul.f32 %v247, %v247
  %v264 = vmul.f32 %v248, %v248
  %v265 = vmul.f32 %v249, %v249
  %v266 = vmul.f32 %v250, %v250
  %v267 = vmul.f32 %v251, %v251
  %v268 = vmul.f32 %v252, %v252
  %v269 = vmul.f32 %v253, %v253
  %v270 = vmul.f32 %v254, %v254
  %v271 = vmul.f32 %v255, %v255
  %v272 = vmul.f32 %v256, %v256
  %v273 = vmul.f32 %v257, %v257
  %v274 = vmul.f32 %v258, %v258
  %v275 = vmul.f32 %v259, %v259
  %v276 = vmul.f32 %v260, %v260
  %v277 = vmul.f32 %v261, %v261
  %vm278 = vcmask 130048
  %v279 = vsel %vm278, %v262, 0.0
  %280 = vadd.xlane.f32.xlu0 %v279
  %v281 = vpop.xlane.xlu0 %280
  %v282 = vsel %vm278, %v263, 0.0
  %283 = vadd.xlane.f32.xlu0 %v282
  %v284 = vpop.xlane.xlu0 %283
  %v285 = vsel %vm278, %v264, 0.0
  %286 = vadd.xlane.f32.xlu0 %v285
  %v287 = vpop.xlane.xlu0 %286
  %v288 = vsel %vm278, %v265, 0.0
  %289 = vadd.xlane.f32.xlu0 %v288
  %v290 = vpop.xlane.xlu0 %289
  %v291 = vsel %vm278, %v266, 0.0
  %292 = vadd.xlane.f32.xlu0 %v291
  %v293 = vpop.xlane.xlu0 %292
  %v294 = vsel %vm278, %v267, 0.0
  %295 = vadd.xlane.f32.xlu0 %v294
  %v296 = vpop.xlane.xlu0 %295
  %v297 = vsel %vm278, %v268, 0.0
  %298 = vadd.xlane.f32.xlu0 %v297
  %v299 = vpop.xlane.xlu0 %298
  %v300 = vsel %vm278, %v269, 0.0
  %301 = vadd.xlane.f32.xlu0 %v300
  %v302 = vpop.xlane.xlu0 %301
  %v303 = vsel %vm278, %v270, 0.0
  %304 = vadd.xlane.f32.xlu0 %v303
  %v305 = vpop.xlane.xlu0 %304
  %v306 = vsel %vm278, %v271, 0.0
  %307 = vadd.xlane.f32.xlu0 %v306
  %v308 = vpop.xlane.xlu0 %307
  %v309 = vsel %vm278, %v272, 0.0
  %310 = vadd.xlane.f32.xlu0 %v309
  %v311 = vpop.xlane.xlu0 %310
  %v312 = vsel %vm278, %v273, 0.0
  %313 = vadd.xlane.f32.xlu0 %v312
  %v314 = vpop.xlane.xlu0 %313
  %v315 = vsel %vm278, %v274, 0.0
  %316 = vadd.xlane.f32.xlu0 %v315
  %v317 = vpop.xlane.xlu0 %316
  %v318 = vsel %vm278, %v275, 0.0
  %319 = vadd.xlane.f32.xlu0 %v318
  %v320 = vpop.xlane.xlu0 %319
  %v321 = vsel %vm278, %v276, 0.0
  %322 = vadd.xlane.f32.xlu0 %v321
  %v323 = vpop.xlane.xlu0 %322
  %v324 = vsel %vm278, %v277, 0.0
  %325 = vadd.xlane.f32.xlu0 %v324
  %v326 = vpop.xlane.xlu0 %325
  %v327 = vrsqrt.pop %v281
  %v328 = vmul.f32 %v281, %v327
  %vm329 = vcmp.eq.f32.partialorder %v281, inf
  %v330 = vsel %vm329, %v281, %v328
  %vm331 = vcmp.eq.f32.partialorder %v281, 0.0
  %v332 = vand.u32 %v281, 2147483648
  %v333 = vsel %vm331, %v332, %v330
  %v334 = vrsqrt.pop %v284
  %v335 = vmul.f32 %v284, %v334
  %vm336 = vcmp.eq.f32.partialorder %v284, inf
  %v337 = vsel %vm336, %v284, %v335
  %vm338 = vcmp.eq.f32.partialorder %v284, 0.0
  %v339 = vand.u32 %v284, 2147483648
  %v340 = vsel %vm338, %v339, %v337
  %v341 = vrsqrt.pop %v287
  %v342 = vmul.f32 %v287, %v341
  %vm343 = vcmp.eq.f32.partialorder %v287, inf
  %v344 = vsel %vm343, %v287, %v342
  %vm345 = vcmp.eq.f32.partialorder %v287, 0.0
  %v346 = vand.u32 %v287, 2147483648
  %v347 = vsel %vm345, %v346, %v344
  %v348 = vrsqrt.pop %v290
  %v349 = vmul.f32 %v290, %v348
  %vm350 = vcmp.eq.f32.partialorder %v290, inf
  %v351 = vsel %vm350, %v290, %v349
  %vm352 = vcmp.eq.f32.partialorder %v290, 0.0
  %v353 = vand.u32 %v290, 2147483648
  %v354 = vsel %vm352, %v353, %v351
  %v355 = vrsqrt.pop %v293
  %v356 = vmul.f32 %v293, %v355
  %vm357 = vcmp.eq.f32.partialorder %v293, inf
  %v358 = vsel %vm357, %v293, %v356
  %vm359 = vcmp.eq.f32.partialorder %v293, 0.0
  %v360 = vand.u32 %v293, 2147483648
  %v361 = vsel %vm359, %v360, %v358
  %v362 = vrsqrt.pop %v296
  %v363 = vmul.f32 %v296, %v362
  %vm364 = vcmp.eq.f32.partialorder %v296, inf
  %v365 = vsel %vm364, %v296, %v363
  %vm366 = vcmp.eq.f32.partialorder %v296, 0.0
  %v367 = vand.u32 %v296, 2147483648
  %v368 = vsel %vm366, %v367, %v365
  %v369 = vrsqrt.pop %v299
  %v370 = vmul.f32 %v299, %v369
  %vm371 = vcmp.eq.f32.partialorder %v299, inf
  %v372 = vsel %vm371, %v299, %v370
  %vm373 = vcmp.eq.f32.partialorder %v299, 0.0
  %v374 = vand.u32 %v299, 2147483648
  %v375 = vsel %vm373, %v374, %v372
  %v376 = vrsqrt.pop %v302
  %v377 = vmul.f32 %v302, %v376
  %vm378 = vcmp.eq.f32.partialorder %v302, inf
  %v379 = vsel %vm378, %v302, %v377
  %vm380 = vcmp.eq.f32.partialorder %v302, 0.0
  %v381 = vand.u32 %v302, 2147483648
  %v382 = vsel %vm380, %v381, %v379
  %v383 = vrsqrt.pop %v305
  %v384 = vmul.f32 %v305, %v383
  %vm385 = vcmp.eq.f32.partialorder %v305, inf
  %v386 = vsel %vm385, %v305, %v384
  %vm387 = vcmp.eq.f32.partialorder %v305, 0.0
  %v388 = vand.u32 %v305, 2147483648
  %v389 = vsel %vm387, %v388, %v386
  %v390 = vrsqrt.pop %v308
  %v391 = vmul.f32 %v308, %v390
  %vm392 = vcmp.eq.f32.partialorder %v308, inf
  %v393 = vsel %vm392, %v308, %v391
  %vm394 = vcmp.eq.f32.partialorder %v308, 0.0
  %v395 = vand.u32 %v308, 2147483648
  %v396 = vsel %vm394, %v395, %v393
  %v397 = vrsqrt.pop %v311
  %v398 = vmul.f32 %v311, %v397
  %vm399 = vcmp.eq.f32.partialorder %v311, inf
  %v400 = vsel %vm399, %v311, %v398
  %vm401 = vcmp.eq.f32.partialorder %v311, 0.0
  %v402 = vand.u32 %v311, 2147483648
  %v403 = vsel %vm401, %v402, %v400
  %v404 = vrsqrt.pop %v314
  %v405 = vmul.f32 %v314, %v404
  %vm406 = vcmp.eq.f32.partialorder %v314, inf
  %v407 = vsel %vm406, %v314, %v405
  %vm408 = vcmp.eq.f32.partialorder %v314, 0.0
  %v409 = vand.u32 %v314, 2147483648
  %v410 = vsel %vm408, %v409, %v407
  %v411 = vrsqrt.pop %v317
  %v412 = vmul.f32 %v317, %v411
  %vm413 = vcmp.eq.f32.partialorder %v317, inf
  %v414 = vsel %vm413, %v317, %v412
  %vm415 = vcmp.eq.f32.partialorder %v317, 0.0
  %v416 = vand.u32 %v317, 2147483648
  %v417 = vsel %vm415, %v416, %v414
  %v418 = vrsqrt.pop %v320
  %v419 = vmul.f32 %v320, %v418
  %vm420 = vcmp.eq.f32.partialorder %v320, inf
  %v421 = vsel %vm420, %v320, %v419
  %vm422 = vcmp.eq.f32.partialorder %v320, 0.0
  %v423 = vand.u32 %v320, 2147483648
  %v424 = vsel %vm422, %v423, %v421
  %v425 = vrsqrt.pop %v323
  %v426 = vmul.f32 %v323, %v425
  %vm427 = vcmp.eq.f32.partialorder %v323, inf
  %v428 = vsel %vm427, %v323, %v426
  %vm429 = vcmp.eq.f32.partialorder %v323, 0.0
  %v430 = vand.u32 %v323, 2147483648
  %v431 = vsel %vm429, %v430, %v428
  %v432 = vrsqrt.pop %v326
  %v433 = vmul.f32 %v326, %v432
  %vm434 = vcmp.eq.f32.partialorder %v326, inf
  %v435 = vsel %vm434, %v326, %v433
  %vm436 = vcmp.eq.f32.partialorder %v326, 0.0
  %v437 = vand.u32 %v326, 2147483648
  %v438 = vsel %vm436, %v437, %v435
  %v439 = vadd.f32 %v333, 1e-08
  %v440 = vadd.f32 %v340, 1e-08
  %v441 = vadd.f32 %v347, 1e-08
  %v442 = vadd.f32 %v354, 1e-08
  %v443 = vadd.f32 %v361, 1e-08
  %v444 = vadd.f32 %v368, 1e-08
  %v445 = vadd.f32 %v375, 1e-08
  %v446 = vadd.f32 %v382, 1e-08
  %v447 = vadd.f32 %v389, 1e-08
  %v448 = vadd.f32 %v396, 1e-08
  %v449 = vadd.f32 %v403, 1e-08
  %v450 = vadd.f32 %v410, 1e-08
  %v451 = vadd.f32 %v417, 1e-08
  %v452 = vadd.f32 %v424, 1e-08
  %v453 = vadd.f32 %v431, 1e-08
  %v454 = vadd.f32 %v438, 1e-08
  %v455 = vrcp.pop %v439
  %v456 = vrcp.pop %v440
  %v457 = vrcp.pop %v441
  %v458 = vrcp.pop %v442
  %v459 = vrcp.pop %v443
  %v460 = vrcp.pop %v444
  %v461 = vrcp.pop %v445
  %v462 = vrcp.pop %v446
  %v463 = vrcp.pop %v447
  %v464 = vrcp.pop %v448
  %v465 = vrcp.pop %v449
  %v466 = vrcp.pop %v450
  %v467 = vrcp.pop %v451
  %v468 = vrcp.pop %v452
  %v469 = vrcp.pop %v453
  %v470 = vrcp.pop %v454
  %v471 = vmul.f32 %v455, 4.0
  %v472 = vmul.f32 %v456, 4.0
  %v473 = vmul.f32 %v457, 4.0
  %v474 = vmul.f32 %v458, 4.0
  %v475 = vmul.f32 %v459, 4.0
  %v476 = vmul.f32 %v460, 4.0
  %v477 = vmul.f32 %v461, 4.0
  %v478 = vmul.f32 %v462, 4.0
  %v479 = vmul.f32 %v463, 4.0
  %v480 = vmul.f32 %v464, 4.0
  %v481 = vmul.f32 %v465, 4.0
  %v482 = vmul.f32 %v466, 4.0
  %v483 = vmul.f32 %v467, 4.0
  %v484 = vmul.f32 %v468, 4.0
  %v485 = vmul.f32 %v469, 4.0
  %v486 = vmul.f32 %v470, 4.0
  %v487 = vmul.f32 %v246, %v471
  %v488 = vmul.f32 %v247, %v472
  %v489 = vmul.f32 %v248, %v473
  %v490 = vmul.f32 %v249, %v474
  %v491 = vmul.f32 %v250, %v475
  %v492 = vmul.f32 %v251, %v476
  %v493 = vmul.f32 %v252, %v477
  %v494 = vmul.f32 %v253, %v478
  %v495 = vmul.f32 %v254, %v479
  %v496 = vmul.f32 %v255, %v480
  %v497 = vmul.f32 %v256, %v481
  %v498 = vmul.f32 %v257, %v482
  %v499 = vmul.f32 %v258, %v483
  %v500 = vmul.f32 %v259, %v484
  %v501 = vmul.f32 %v260, %v485
  %v502 = vmul.f32 %v261, %v486
  %503 = vst.msk [vmem:[%s2] sm:$0xff] %vm278, %v487
  %504 = vst.msk [vmem:[%s2 + $0x8] sm:$0xff] %vm278, %v488
  %505 = vst.msk [vmem:[%s2 + $0x10] sm:$0xff] %vm278, %v489
  %506 = vst.msk [vmem:[%s2 + $0x18] sm:$0xff] %vm278, %v490
  %507 = vst.msk [vmem:[%s2 + $0x20] sm:$0xff] %vm278, %v491
  %508 = vst.msk [vmem:[%s2 + $0x28] sm:$0xff] %vm278, %v492
  %509 = vst.msk [vmem:[%s2 + $0x30] sm:$0xff] %vm278, %v493
  %510 = vst.msk [vmem:[%s2 + $0x38] sm:$0xff] %vm278, %v494
  %511 = vst.msk [vmem:[%s2 + $0x40] sm:$0xff] %vm278, %v495
  %512 = vst.msk [vmem:[%s2 + $0x48] sm:$0xff] %vm278, %v496
  %513 = vst.msk [vmem:[%s2 + $0x50] sm:$0xff] %vm278, %v497
  %514 = vst.msk [vmem:[%s2 + $0x58] sm:$0xff] %vm278, %v498
  %515 = vst.msk [vmem:[%s2 + $0x60] sm:$0xff] %vm278, %v499
  %516 = vst.msk [vmem:[%s2 + $0x68] sm:$0xff] %vm278, %v500
  %517 = vst.msk [vmem:[%s2 + $0x70] sm:$0xff] %vm278, %v501
  %518 = vst.msk [vmem:[%s2 + $0x78] sm:$0xff] %vm278, %v502
  // Predicated region
  $region10: #{_net_e_forward.5} parent=0 // pred_check
    _
  $region11: #{_net_e_forward.5} parent=0 // pred_check_branch
    %520 = sbr.rel (0) target = $region13
  $region12: #{_net_e_forward.5} parent=0 // pred_region
    _
  $region13: #{_net_e_forward.5} parent=0 // pred_fallthru
    _
  // Predicated region
  $region14: #{_net_e_forward.5} parent=0 // pred_check
    _
  $region15: #{_net_e_forward.5} parent=0 // pred_check_branch
    %522 = sbr.rel (0) target = $region17
  $region16: #{_net_e_forward.5} parent=0 // pred_region
    _
  $region17: #{_net_e_forward.5} parent=0 // pred_fallthru
    _

// kernel: _net_e_forward.6
$region0: #{_net_e_forward.6}
  #allocation0 [shape = 'u32[]', space=smem, size = 0x4, offset = 0x4, fixed_abs, tag = 'smem constant byte address 0x4 - core index']
  #allocation1 [shape = 'u32[144,128]{1,0:T(1,128)}', space=vmem, size = 0x12000, scoped, tag = 'internal scratch']
  %s0 = inlined_call_operand.vmem [shape: f32[32,144], index: 0, kind: input, shape index: {}]
  %s1 = inlined_call_operand.vmem [shape: f32[144,32], index: 1, kind: input, shape index: {}]
  %s2 = inlined_call_operand.vmem [shape: f32[32,32], index: 2, kind: output, shape index: {}]
  %s3 = sld [smem:[#allocation0]]
  $region18: #{_net_e_forward.6} parent=0
    _
  %s5 = ssub.s32 1, %s3
  %s6 = scalar_select 0, %s5, %s3
  // Predicated region
  $region2: #{_net_e_forward.6} parent=0 // pred_check
    _
  $region3: #{_net_e_forward.6} parent=0 // pred_check_branch
    %8 = sbr.rel (0) target = $region5
  $region4: #{_net_e_forward.6} parent=0 // pred_region
    _
  $region5: #{_net_e_forward.6} parent=0 // pred_fallthru
    _
  // Predicated region
  $region6: #{_net_e_forward.6} parent=0 // pred_check
    _
  $region7: #{_net_e_forward.6} parent=0 // pred_check_branch
    %10 = sbr.rel (0) target = $region9
  $region8: #{_net_e_forward.6} parent=0 // pred_region
    _
  $region9: #{_net_e_forward.6} parent=0 // pred_fallthru
    _
  %v11 = vld [vmem:[%s0] sm:$0xff]
  %v12 = vld [vmem:[%s0 + $0x8] sm:$0xff]
  %v13 = vld [vmem:[%s0 + $0x10] sm:$0xff]
  %v14 = vld [vmem:[%s0 + $0x18] sm:$0xff]
  %v15 = vld [vmem:[%s0 + $0x20] sm:$0xff]
  %v16 = vld [vmem:[%s0 + $0x28] sm:$0xff]
  %v17 = vld [vmem:[%s0 + $0x30] sm:$0xff]
  %v18 = vld [vmem:[%s0 + $0x38] sm:$0xff]
  %v19 = vld [vmem:[%s1] sm:$0xff]
  %v20 = vld [vmem:[%s1 + $0x8] sm:$0xff]
  %v21 = vld [vmem:[%s1 + $0x10] sm:$0xff]
  %v22 = vld [vmem:[%s1 + $0x18] sm:$0xff]
  %v23 = vld [vmem:[%s1 + $0x20] sm:$0xff]
  %v24 = vld [vmem:[%s1 + $0x28] sm:$0xff]
  %v25 = vld [vmem:[%s1 + $0x30] sm:$0xff]
  %v26 = vld [vmem:[%s1 + $0x38] sm:$0xff]
  %v27 = vld [vmem:[%s1 + $0x40] sm:$0xff]
  %v28 = vld [vmem:[%s1 + $0x48] sm:$0xff]
  %v29 = vld [vmem:[%s1 + $0x50] sm:$0xff]
  %v30 = vld [vmem:[%s1 + $0x58] sm:$0xff]
  %v31 = vld [vmem:[%s1 + $0x60] sm:$0xff]
  %v32 = vld [vmem:[%s1 + $0x68] sm:$0xff]
  %v33 = vld [vmem:[%s1 + $0x70] sm:$0xff]
  %v34 = vld [vmem:[%s1 + $0x78] sm:$0xff]
  %v35 = vld [vmem:[%s1 + $0x80] sm:$0xff]
  %v36 = vld [vmem:[%s1 + $0x88] sm:$0xff]
  %vm37 = vcmask 130048
  %v39 = vsel %vm37, %v12, 0
  %v42 = vsel %vm37, %v14, 0
  %v45 = vsel %vm37, %v16, 0
  %v48 = vsel %vm37, %v18, 0
  %50 = vmatprep.subr.mxu0 0.0
  %51 = vmatpush1.msra.mxu0 %v34
  %52 = vmatprep.subr.mxu0 0.0
  %53 = vmatpush1.msra.mxu0 %v33
  %54 = vmatprep.subr.mxu0 0.0
  %55 = vmatpush1.msra.mxu0 %v32
  %56 = vmatprep.subr.mxu0 0.0
  %57 = vmatpush1.msra.mxu0 %v31
  %58 = vmatprep.subr.mxu0 0.0
  %59 = vmatpush1.msra.mxu0 %v30
  %60 = vmatprep.subr.mxu0 0.0
  %61 = vmatpush1.msra.mxu0 %v29
  %62 = vmatprep.subr.mxu0 0.0
  %63 = vmatpush1.msra.mxu0 %v28
  %64 = vmatprep.subr.mxu0 0.0
  %65 = vmatpush1.msra.mxu0 %v27
  %66 = vmatprep.subr.mxu0 0.0
  %67 = vmatpush1.msra.mxu0 %v26
  %68 = vmatprep.subr.mxu0 0.0
  %69 = vmatpush1.msra.mxu0 %v25
  %70 = vmatprep.subr.mxu0 0.0
  %71 = vmatpush1.msra.mxu0 %v24
  %72 = vmatprep.subr.mxu0 0.0
  %73 = vmatpush1.msra.mxu0 %v23
  %74 = vmatprep.subr.mxu0 0.0
  %75 = vmatpush1.msra.mxu0 %v22
  %76 = vmatprep.subr.mxu0 0.0
  %77 = vmatpush1.msra.mxu0 %v21
  %78 = vmatprep.subr.mxu0 0.0
  %79 = vmatpush1.msra.mxu0 %v20
  %80 = vmatprep.subr.mxu0 0.0
  %81 = vmatpush1.msra.mxu0 %v19
  %82 = vmatprep.subr.mxu0 0.0
  %83 = vmatpush2.msra.mxu0 0.0
  %84 = vmatprep.subr.mxu0 0.0
  %85 = vmatpush2.msra.mxu0 0.0
  %86 = vmatprep.subr.mxu0 0.0
  %87 = vmatpush2.msra.mxu0 0.0
  %88 = vmatprep.subr.mxu0 0.0
  %89 = vmatpush2.msra.mxu0 0.0
  %90 = vmatprep.subr.mxu0 0.0
  %91 = vmatpush2.msra.mxu0 0.0
  %92 = vmatprep.subr.mxu0 0.0
  %93 = vmatpush2.msra.mxu0 0.0
  %94 = vmatprep.subr.mxu0 0.0
  %95 = vmatpush2.msra.mxu0 0.0
  %96 = vmatprep.subr.mxu0 0.0
  %97 = vmatpush2.msra.mxu0 0.0
  %98 = vmatprep.subr.mxu0 0.0
  %99 = vmatpush2.msra.mxu0 0.0
  %100 = vmatprep.subr.mxu0 0.0
  %101 = vmatpush2.msra.mxu0 0.0
  %102 = vmatprep.subr.mxu0 0.0
  %103 = vmatpush2.msra.mxu0 0.0
  %104 = vmatprep.subr.mxu0 0.0
  %105 = vmatpush2.msra.mxu0 0.0
  %106 = vmatprep.subr.mxu0 0.0
  %107 = vmatpush2.msra.mxu0 0.0
  %108 = vmatprep.subr.mxu0 0.0
  %109 = vmatpush2.msra.mxu0 0.0
  %110 = vmatprep.subr.mxu0 0.0
  %111 = vmatpush2.msra.mxu0 %v36
  %112 = vmatprep.subr.mxu0 0.0
  %113 = vmatpush2.msra.mxu0 %v35
  %114 = vmatprep.mubr.f32.mxu0 %v39
  %115 = vmatmul.mubr.f32.gmra.mxu0 %v11
  %v116 = vpop.f32.mrf.mxu0
  %v117 = vadd.f32 0.0, %v116
  %v118 = vpop.f32.mrf.mxu0
  %119 = vmatprep.mubr.f32.mxu0 %v42
  %120 = vmatmul.mubr.f32.gmra.mxu0 %v13
  %v121 = vpop.f32.mrf.mxu0
  %v122 = vadd.f32 0.0, %v121
  %v123 = vpop.f32.mrf.mxu0
  %124 = vmatprep.mubr.f32.mxu0 %v45
  %125 = vmatmul.mubr.f32.gmra.mxu0 %v15
  %v126 = vpop.f32.mrf.mxu0
  %v127 = vadd.f32 0.0, %v126
  %v128 = vpop.f32.mrf.mxu0
  %129 = vmatprep.mubr.f32.mxu0 %v48
  %130 = vmatmul.mubr.f32.gmra.mxu0 %v17
  %v131 = vpop.f32.mrf.mxu0
  %v132 = vadd.f32 0.0, %v131
  %v133 = vpop.f32.mrf.mxu0
  %134 = vdwg.mxu0
  %v135 = vmul.f32 %v117, 0.2
  %v136 = vmul.f32 %v122, 0.2
  %v137 = vmul.f32 %v127, 0.2
  %v138 = vmul.f32 %v132, 0.2
  %v139 = vmax.f32 %v117, %v135
  %v140 = vmax.f32 %v122, %v136
  %v141 = vmax.f32 %v127, %v137
  %v142 = vmax.f32 %v132, %v138
  %v143 = vmul.f32 %v139, %v139
  %v144 = vmul.f32 %v140, %v140
  %v145 = vmul.f32 %v141, %v141
  %v146 = vmul.f32 %v142, %v142
  %vm147 = vcmask 261120
  %v148 = vsel %vm147, %v143, 0.0
  %149 = vadd.xlane.f32.xlu0 %v148
  %v150 = vpop.xlane.xlu0 %149
  %v151 = vsel %vm147, %v144, 0.0
  %152 = vadd.xlane.f32.xlu0 %v151
  %v153 = vpop.xlane.xlu0 %152
  %v154 = vsel %vm147, %v145, 0.0
  %155 = vadd.xlane.f32.xlu0 %v154
  %v156 = vpop.xlane.xlu0 %155
  %v157 = vsel %vm147, %v146, 0.0
  %158 = vadd.xlane.f32.xlu0 %v157
  %v159 = vpop.xlane.xlu0 %158
  %v160 = vrsqrt.pop %v150
  %v161 = vmul.f32 %v150, %v160
  %vm162 = vcmp.eq.f32.partialorder %v150, inf
  %v163 = vsel %vm162, %v150, %v161
  %vm164 = vcmp.eq.f32.partialorder %v150, 0.0
  %v165 = vand.u32 %v150, 2147483648
  %v166 = vsel %vm164, %v165, %v163
  %v167 = vrsqrt.pop %v153
  %v168 = vmul.f32 %v153, %v167
  %vm169 = vcmp.eq.f32.partialorder %v153, inf
  %v170 = vsel %vm169, %v153, %v168
  %vm171 = vcmp.eq.f32.partialorder %v153, 0.0
  %v172 = vand.u32 %v153, 2147483648
  %v173 = vsel %vm171, %v172, %v170
  %v174 = vrsqrt.pop %v156
  %v175 = vmul.f32 %v156, %v174
  %vm176 = vcmp.eq.f32.partialorder %v156, inf
  %v177 = vsel %vm176, %v156, %v175
  %vm178 = vcmp.eq.f32.partialorder %v156, 0.0
  %v179 = vand.u32 %v156, 2147483648
  %v180 = vsel %vm178, %v179, %v177
  %v181 = vrsqrt.pop %v159
  %v182 = vmul.f32 %v159, %v181
  %vm183 = vcmp.eq.f32.partialorder %v159, inf
  %v184 = vsel %vm183, %v159, %v182
  %vm185 = vcmp.eq.f32.partialorder %v159, 0.0
  %v186 = vand.u32 %v159, 2147483648
  %v187 = vsel %vm185, %v186, %v184
  %v188 = vadd.f32 %v166, 1e-08
  %v189 = vadd.f32 %v173, 1e-08
  %v190 = vadd.f32 %v180, 1e-08
  %v191 = vadd.f32 %v187, 1e-08
  %v192 = vrcp.pop %v188
  %v193 = vrcp.pop %v189
  %v194 = vrcp.pop %v190
  %v195 = vrcp.pop %v191
  %v196 = vmul.f32 %v192, 5.656854
  %v197 = vmul.f32 %v193, 5.656854
  %v198 = vmul.f32 %v194, 5.656854
  %v199 = vmul.f32 %v195, 5.656854
  %v200 = vmul.f32 %v139, %v196
  %v201 = vmul.f32 %v140, %v197
  %v202 = vmul.f32 %v141, %v198
  %v203 = vmul.f32 %v142, %v199
  %204 = vst.msk [vmem:[%s2] sm:$0xff] %vm147, %v200
  %205 = vst.msk [vmem:[%s2 + $0x8] sm:$0xff] %vm147, %v201
  %206 = vst.msk [vmem:[%s2 + $0x10] sm:$0xff] %vm147, %v202
  %207 = vst.msk [vmem:[%s2 + $0x18] sm:$0xff] %vm147, %v203
  // Predicated region
  $region10: #{_net_e_forward.6} parent=0 // pred_check
    _
  $region11: #{_net_e_forward.6} parent=0 // pred_check_branch
    %209 = sbr.rel (0) target = $region13
  $region12: #{_net_e_forward.6} parent=0 // pred_region
    _
  $region13: #{_net_e_forward.6} parent=0 // pred_fallthru
    _
  // Predicated region
  $region14: #{_net_e_forward.6} parent=0 // pred_check
    _
  $region15: #{_net_e_forward.6} parent=0 // pred_check_branch
    %211 = sbr.rel (0) target = $region17
  $region16: #{_net_e_forward.6} parent=0 // pred_region
    _
  $region17: #{_net_e_forward.6} parent=0 // pred_fallthru
    _

// kernel: _net_e_forward.7
$region0: #{_net_e_forward.7}
  #allocation0 [shape = 'u32[]', space=smem, size = 0x4, offset = 0x4, fixed_abs, tag = 'smem constant byte address 0x4 - core index']
  #allocation1 [shape = 'u32[144,128]{1,0:T(1,128)}', space=vmem, size = 0x12000, scoped, tag = 'internal scratch']
  %s0 = inlined_call_operand.vmem [shape: f32[2,128], index: 0, kind: input, shape index: {}]
  %s1 = inlined_call_operand.vmem [shape: f32[128,32], index: 1, kind: input, shape index: {}]
  %s2 = inlined_call_operand.vmem [shape: f32[32,32], index: 2, kind: input, shape index: {}]
  %s3 = inlined_call_operand.vmem [shape: f32[1,32], index: 3, kind: input, shape index: {}]
  %s4 = inlined_call_operand.vmem [shape: f32[32,32], index: 4, kind: input, shape index: {}]
  %s5 = inlined_call_operand.vmem [shape: f32[1,32], index: 5, kind: input, shape index: {}]
  %s6 = inlined_call_operand.hbm [shape: f32[2,32], index: 6, kind: output, shape index: {0}]
  %s7 = inlined_call_operand.hbm [shape: f32[2,32], index: 7, kind: output, shape index: {1}]
  %8 = xla_tuple %s6, %s7
  %s9 = sld [smem:[#allocation0]]
  $region42: #{_net_e_forward.7} parent=0
    _
  %s11 = ssub.s32 1, %s9
  %s12 = scalar_select 0, %s11, %s9
  $region1: #{_net_e_forward.7} parent=0
    #allocation2 [shape = 'u8[1024]{0}', space=vmem, size = 0x400, scoped, tag = 'output window, operand 0, single buffered']
    #allocation3 [shape = 's32[1]{0}', space=sflag, size = 0x4, scoped, tag = 'scoped memory for _net_e_forward.7']
    #allocation4 [shape = 'u8[1024]{0}', space=vmem, size = 0x400, scoped, tag = 'output window, operand 1, single buffered']
    #allocation5 [shape = 's32[1]{0}', space=sflag, size = 0x4, scoped, tag = 'scoped memory for _net_e_forward.7']
    %13 = vsyncpa [#allocation3], 0
    %14 = vsyncpa [#allocation5], 0
    // Predicated region
    $region2: #{_net_e_forward.7} parent=1 // pred_check
      _
    $region3: #{_net_e_forward.7} parent=1 // pred_check_branch
      %16 = sbr.rel (0) target = $region5
    $region4: #{_net_e_forward.7} parent=1 // pred_region
      _
    $region5: #{_net_e_forward.7} parent=1 // pred_fallthru
      _
    // Predicated region
    $region6: #{_net_e_forward.7} parent=1 // pred_check
      _
    $region7: #{_net_e_forward.7} parent=1 // pred_check_branch
      %18 = sbr.rel (0) target = $region9
    $region8: #{_net_e_forward.7} parent=1 // pred_region
      _
    $region9: #{_net_e_forward.7} parent=1 // pred_fallthru
      _
    // Predicated region
    $region10: #{_net_e_forward.7} parent=1 // pred_check
      _
    $region11: #{_net_e_forward.7} parent=1 // pred_check_branch
      %20 = sbr.rel (0) target = $region13
    $region12: #{_net_e_forward.7} parent=1 // pred_region
      _
    $region13: #{_net_e_forward.7} parent=1 // pred_fallthru
      _
    // Predicated region
    $region14: #{_net_e_forward.7} parent=1 // pred_check
      _
    $region15: #{_net_e_forward.7} parent=1 // pred_check_branch
      %22 = sbr.rel (0) target = $region17
    $region16: #{_net_e_forward.7} parent=1 // pred_region
      _
    $region17: #{_net_e_forward.7} parent=1 // pred_fallthru
      _
    // Predicated region
    $region18: #{_net_e_forward.7} parent=1 // pred_check
      _
    $region19: #{_net_e_forward.7} parent=1 // pred_check_branch
      %24 = sbr.rel (0) target = $region21
    $region20: #{_net_e_forward.7} parent=1 // pred_region
      _
    $region21: #{_net_e_forward.7} parent=1 // pred_fallthru
      _
    // Predicated region
    $region22: #{_net_e_forward.7} parent=1 // pred_check
      _
    $region23: #{_net_e_forward.7} parent=1 // pred_check_branch
      %26 = sbr.rel (0) target = $region25
    $region24: #{_net_e_forward.7} parent=1 // pred_region
      _
    $region25: #{_net_e_forward.7} parent=1 // pred_fallthru
      _
    %v27 = vld [vmem:[%s0] sm:$0x3]
    %v28 = vld [vmem:[%s1] sm:$0xff]
    %v29 = vld [vmem:[%s1 + $0x8] sm:$0xff]
    %v30 = vld [vmem:[%s1 + $0x10] sm:$0xff]
    %v31 = vld [vmem:[%s1 + $0x18] sm:$0xff]
    %v32 = vld [vmem:[%s1 + $0x20] sm:$0xff]
    %v33 = vld [vmem:[%s1 + $0x28] sm:$0xff]
    %v34 = vld [vmem:[%s1 + $0x30] sm:$0xff]
    %v35 = vld [vmem:[%s1 + $0x38] sm:$0xff]
    %v36 = vld [vmem:[%s1 + $0x40] sm:$0xff]
    %v37 = vld [vmem:[%s1 + $0x48] sm:$0xff]
    %v38 = vld [vmem:[%s1 + $0x50] sm:$0xff]
    %v39 = vld [vmem:[%s1 + $0x58] sm:$0xff]
    %v40 = vld [vmem:[%s1 + $0x60] sm:$0xff]
    %v41 = vld [vmem:[%s1 + $0x68] sm:$0xff]
    %v42 = vld [vmem:[%s1 + $0x70] sm:$0xff]
    %v43 = vld [vmem:[%s1 + $0x78] sm:$0xff]
    %44 = vmatprep.subr.mxu0 0.0
    %45 = vmatpush1.msra.mxu0 %v43
    %46 = vmatprep.subr.mxu0 0.0
    %47 = vmatpush1.msra.mxu0 %v42
    %48 = vmatprep.subr.mxu0 0.0
    %49 = vmatpush1.msra.mxu0 %v41
    %50 = vmatprep.subr.mxu0 0.0
    %51 = vmatpush1.msra.mxu0 %v40
    %52 = vmatprep.subr.mxu0 0.0
    %53 = vmatpush1.msra.mxu0 %v39
    %54 = vmatprep.subr.mxu0 0.0
    %55 = vmatpush1.msra.mxu0 %v38
    %56 = vmatprep.subr.mxu0 0.0
    %57 = vmatpush1.msra.mxu0 %v37
    %58 = vmatprep.subr.mxu0 0.0
    %59 = vmatpush1.msra.mxu0 %v36
    %60 = vmatprep.subr.mxu0 0.0
    %61 = vmatpush1.msra.mxu0 %v35
    %62 = vmatprep.subr.mxu0 0.0
    %63 = vmatpush1.msra.mxu0 %v34
    %64 = vmatprep.subr.mxu0 0.0
    %65 = vmatpush1.msra.mxu0 %v33
    %66 = vmatprep.subr.mxu0 0.0
    %67 = vmatpush1.msra.mxu0 %v32
    %68 = vmatprep.subr.mxu0 0.0
    %69 = vmatpush1.msra.mxu0 %v31
    %70 = vmatprep.subr.mxu0 0.0
    %71 = vmatpush1.msra.mxu0 %v30
    %72 = vmatprep.subr.mxu0 0.0
    %73 = vmatpush1.msra.mxu0 %v29
    %74 = vmatprep.subr.mxu0 0.0
    %75 = vmatpush1.msra.mxu0 %v28
    %76 = vmatprep.subr.mxu0 0.0
    %77 = vmatpush2.msra.mxu0 0.0
    %78 = vmatprep.subr.mxu0 0.0
    %79 = vmatpush2.msra.mxu0 0.0
    %80 = vmatprep.subr.mxu0 0.0
    %81 = vmatpush2.msra.mxu0 0.0
    %82 = vmatprep.subr.mxu0 0.0
    %83 = vmatpush2.msra.mxu0 0.0
    %84 = vmatprep.subr.mxu0 0.0
    %85 = vmatpush2.msra.mxu0 0.0
    %86 = vmatprep.subr.mxu0 0.0
    %87 = vmatpush2.msra.mxu0 0.0
    %88 = vmatprep.subr.mxu0 0.0
    %89 = vmatpush2.msra.mxu0 0.0
    %90 = vmatprep.subr.mxu0 0.0
    %91 = vmatpush2.msra.mxu0 0.0
    %92 = vmatprep.subr.mxu0 0.0
    %93 = vmatpush2.msra.mxu0 0.0
    %94 = vmatprep.subr.mxu0 0.0
    %95 = vmatpush2.msra.mxu0 0.0
    %96 = vmatprep.subr.mxu0 0.0
    %97 = vmatpush2.msra.mxu0 0.0
    %98 = vmatprep.subr.mxu0 0.0
    %99 = vmatpush2.msra.mxu0 0.0
    %100 = vmatprep.subr.mxu0 0.0
    %101 = vmatpush2.msra.mxu0 0.0
    %102 = vmatprep.subr.mxu0 0.0
    %103 = vmatpush2.msra.mxu0 0.0
    %104 = vmatprep.subr.mxu0 0.0
    %105 = vmatpush2.msra.mxu0 0.0
    %106 = vmatprep.subr.mxu0 0.0
    %107 = vmatpush2.msra.mxu0 0.0
    %108 = vmatprep.mubr.f32.mxu0 0.0
    %109 = vmatmul.mubr.f32.gmra.mxu0 %v27
    %v110 = vpop.f32.mrf.mxu0
    %v111 = vadd.f32 0.0, %v110
    %v112 = vpop.f32.mrf.mxu0
    %113 = vdwg.mxu0
    %v114 = vmul.f32 %v111, 0.2
    %v115 = vmax.f32 %v111, %v114
    %v116 = vmul.f32 %v115, %v115
    %vm117 = vcmask 254976
    %v118 = vsel %vm117, %v116, 0.0
    %119 = vadd.xlane.f32.xlu0 %v118
    %v120 = vpop.xlane.xlu0 %119
    %v121 = vrsqrt.pop %v120
    %v122 = vmul.f32 %v120, %v121
    %vm123 = vcmp.eq.f32.partialorder %v120, inf
    %v124 = vsel %vm123, %v120, %v122
    %vm125 = vcmp.eq.f32.partialorder %v120, 0.0
    %v126 = vand.u32 %v120, 2147483648
    %v127 = vsel %vm125, %v126, %v124
    %v128 = vadd.f32 %v127, 1e-08
    %v129 = vrcp.pop %v128
    %v130 = vmul.f32 %v129, 5.656854
    %v131 = vmul.f32 %v115, %v130
    %v132 = vld [vmem:[%s2] sm:$0xff]
    %v133 = vld [vmem:[%s2 + $0x8] sm:$0xff]
    %v134 = vld [vmem:[%s2 + $0x10] sm:$0xff]
    %v135 = vld [vmem:[%s2 + $0x18] sm:$0xff]
    %v136 = vld [vmem:[%s3] sm:$0x1]
    %v138 = vlaneseq
    %v139 = vshrl.u32 %v138, 7
    %v140 = vsub.s32 0, %v139
    %v141 = vrot.slane %v136, %v140
    %vm143 = vcmask 261120
    %v145 = vsel %vm143, %v131, 0
    %147 = vmatprep.subr.mxu0 0.0
    %148 = vmatpush1.msra.mxu0 0.0
    %149 = vmatprep.subr.mxu0 0.0
    %150 = vmatpush1.msra.mxu0 0.0
    %151 = vmatprep.subr.mxu0 0.0
    %152 = vmatpush1.msra.mxu0 0.0
    %153 = vmatprep.subr.mxu0 0.0
    %154 = vmatpush1.msra.mxu0 0.0
    %155 = vmatprep.subr.mxu0 0.0
    %156 = vmatpush1.msra.mxu0 0.0
    %157 = vmatprep.subr.mxu0 0.0
    %158 = vmatpush1.msra.mxu0 0.0
    %159 = vmatprep.subr.mxu0 0.0
    %160 = vmatpush1.msra.mxu0 0.0
    %161 = vmatprep.subr.mxu0 0.0
    %162 = vmatpush1.msra.mxu0 0.0
    %163 = vmatprep.subr.mxu0 0.0
    %164 = vmatpush1.msra.mxu0 0.0
    %165 = vmatprep.subr.mxu0 0.0
    %166 = vmatpush1.msra.mxu0 0.0
    %167 = vmatprep.subr.mxu0 0.0
    %168 = vmatpush1.msra.mxu0 0.0
    %169 = vmatprep.subr.mxu0 0.0
    %170 = vmatpush1.msra.mxu0 0.0
    %171 = vmatprep.subr.mxu0 0.0
    %172 = vmatpush1.msra.mxu0 %v135
    %173 = vmatprep.subr.mxu0 0.0
    %174 = vmatpush1.msra.mxu0 %v134
    %175 = vmatprep.subr.mxu0 0.0
    %176 = vmatpush1.msra.mxu0 %v133
    %177 = vmatprep.subr.mxu0 0.0
    %178 = vmatpush1.msra.mxu0 %v132
    %179 = vmatprep.subr.mxu0 0.0
    %180 = vmatpush2.msra.mxu0 0.0
    %181 = vmatprep.subr.mxu0 0.0
    %182 = vmatpush2.msra.mxu0 0.0
    %183 = vmatprep.subr.mxu0 0.0
    %184 = vmatpush2.msra.mxu0 0.0
    %185 = vmatprep.subr.mxu0 0.0
    %186 = vmatpush2.msra.mxu0 0.0
    %187 = vmatprep.subr.mxu0 0.0
    %188 = vmatpush2.msra.mxu0 0.0
    %189 = vmatprep.subr.mxu0 0.0
    %190 = vmatpush2.msra.mxu0 0.0
    %191 = vmatprep.subr.mxu0 0.0
    %192 = vmatpush2.msra.mxu0 0.0
    %193 = vmatprep.subr.mxu0 0.0
    %194 = vmatpush2.msra.mxu0 0.0
    %195 = vmatprep.subr.mxu0 0.0
    %196 = vmatpush2.msra.mxu0 0.0
    %197 = vmatprep.subr.mxu0 0.0
    %198 = vmatpush2.msra.mxu0 0.0
    %199 = vmatprep.subr.mxu0 0.0
    %200 = vmatpush2.msra.mxu0 0.0
    %201 = vmatprep.subr.mxu0 0.0
    %202 = vmatpush2.msra.mxu0 0.0
    %203 = vmatprep.subr.mxu0 0.0
    %204 = vmatpush2.msra.mxu0 0.0
    %205 = vmatprep.subr.mxu0 0.0
    %206 = vmatpush2.msra.mxu0 0.0
    %207 = vmatprep.subr.mxu0 0.0
    %208 = vmatpush2.msra.mxu0 0.0
    %209 = vmatprep.subr.mxu0 0.0
    %210 = vmatpush2.msra.mxu0 0.0
    %211 = vmatprep.mubr.f32.mxu0 0.0
    %212 = vmatmul.mubr.f32.gmra.mxu0 %v145
    %v213 = vpop.f32.mrf.mxu0
    %v214 = vadd.f32 %v141, %v213
    %v215 = vpop.f32.mrf.mxu0
    %216 = vdwg.mxu0
    %217 = vst.msk [vmem:[#allocation2] sm:$0x3] %vm117, %v214
    %v218 = vld [vmem:[%s4] sm:$0xff]
    %v219 = vld [vmem:[%s4 + $0x8] sm:$0xff]
    %v220 = vld [vmem:[%s4 + $0x10] sm:$0xff]
    %v221 = vld [vmem:[%s4 + $0x18] sm:$0xff]
    %v222 = vld [vmem:[%s5] sm:$0x1]
    %v224 = vlaneseq
    %v225 = vshrl.u32 %v224, 7
    %v226 = vsub.s32 0, %v225
    %v227 = vrot.slane %v222, %v226
    %229 = vmatprep.subr.mxu0 0.0
    %230 = vmatpush1.msra.mxu0 0.0
    %231 = vmatprep.subr.mxu0 0.0
    %232 = vmatpush1.msra.mxu0 0.0
    %233 = vmatprep.subr.mxu0 0.0
    %234 = vmatpush1.msra.mxu0 0.0
    %235 = vmatprep.subr.mxu0 0.0
    %236 = vmatpush1.msra.mxu0 0.0
    %237 = vmatprep.subr.mxu0 0.0
    %238 = vmatpush1.msra.mxu0 0.0
    %239 = vmatprep.subr.mxu0 0.0
    %240 = vmatpush1.msra.mxu0 0.0
    %241 = vmatprep.subr.mxu0 0.0
    %242 = vmatpush1.msra.mxu0 0.0
    %243 = vmatprep.subr.mxu0 0.0
    %244 = vmatpush1.msra.mxu0 0.0
    %245 = vmatprep.subr.mxu0 0.0
    %246 = vmatpush1.msra.mxu0 0.0
    %247 = vmatprep.subr.mxu0 0.0
    %248 = vmatpush1.msra.mxu0 0.0
    %249 = vmatprep.subr.mxu0 0.0
    %250 = vmatpush1.msra.mxu0 0.0
    %251 = vmatprep.subr.mxu0 0.0
    %252 = vmatpush1.msra.mxu0 0.0
    %253 = vmatprep.subr.mxu0 0.0
    %254 = vmatpush1.msra.mxu0 %v221
    %255 = vmatprep.subr.mxu0 0.0
    %256 = vmatpush1.msra.mxu0 %v220
    %257 = vmatprep.subr.mxu0 0.0
    %258 = vmatpush1.msra.mxu0 %v219
    %259 = vmatprep.subr.mxu0 0.0
    %260 = vmatpush1.msra.mxu0 %v218
    %261 = vmatprep.subr.mxu0 0.0
    %262 = vmatpush2.msra.mxu0 0.0
    %263 = vmatprep.subr.mxu0 0.0
    %264 = vmatpush2.msra.mxu0 0.0
    %265 = vmatprep.subr.mxu0 0.0
    %266 = vmatpush2.msra.mxu0 0.0
    %267 = vmatprep.subr.mxu0 0.0
    %268 = vmatpush2.msra.mxu0 0.0
    %269 = vmatprep.subr.mxu0 0.0
    %270 = vmatpush2.msra.mxu0 0.0
    %271 = vmatprep.subr.mxu0 0.0
    %272 = vmatpush2.msra.mxu0 0.0
    %273 = vmatprep.subr.mxu0 0.0
    %274 = vmatpush2.msra.mxu0 0.0
    %275 = vmatprep.subr.mxu0 0.0
    %276 = vmatpush2.msra.mxu0 0.0
    %277 = vmatprep.subr.mxu0 0.0
    %278 = vmatpush2.msra.mxu0 0.0
    %279 = vmatprep.subr.mxu0 0.0
    %280 = vmatpush2.msra.mxu0 0.0
    %281 = vmatprep.subr.mxu0 0.0
    %282 = vmatpush2.msra.mxu0 0.0
    %283 = vmatprep.subr.mxu0 0.0
    %284 = vmatpush2.msra.mxu0 0.0
    %285 = vmatprep.subr.mxu0 0.0
    %286 = vmatpush2.msra.mxu0 0.0
    %287 = vmatprep.subr.mxu0 0.0
    %288 = vmatpush2.msra.mxu0 0.0
    %289 = vmatprep.subr.mxu0 0.0
    %290 = vmatpush2.msra.mxu0 0.0
    %291 = vmatprep.subr.mxu0 0.0
    %292 = vmatpush2.msra.mxu0 0.0
    %293 = vmatprep.mubr.f32.mxu0 0.0
    %294 = vmatmul.mubr.f32.gmra.mxu0 %v145
    %v295 = vpop.f32.mrf.mxu0
    %v296 = vadd.f32 %v227, %v295
    %v297 = vpop.f32.mrf.mxu0
    %298 = vdwg.mxu0
    %299 = vst.msk [vmem:[#allocation4] sm:$0x3] %vm117, %v296
    // Predicated region
    $region26: #{_net_e_forward.7} parent=1 // pred_check
      _
    $region27: #{_net_e_forward.7} parent=1 // pred_check_branch
      %301 = sbr.rel (0) target = $region29
    $region28: #{_net_e_forward.7} parent=1 // pred_region
      %s303 = ssub.s32 32, 32
      %304 = vsyncadd [#allocation3], %s303
      %s306 = sshll.u32 [#allocation2], 4
      %s307 = int_to_ptr.vmem [resolvable:$true] %s306
      %309 = dma.vmem_to_hbm [thread:$0]  %s307, 32, %s6, [#allocation3]
    $region29: #{_net_e_forward.7} parent=1 // pred_fallthru
      _
    // Predicated region
    $region30: #{_net_e_forward.7} parent=1 // pred_check
      _
    $region31: #{_net_e_forward.7} parent=1 // pred_check_branch
      %311 = sbr.rel (0) target = $region33
    $region32: #{_net_e_forward.7} parent=1 // pred_region
      %s313 = ssub.s32 32, 32
      %314 = vsyncadd [#allocation5], %s313
      %s316 = sshll.u32 [#allocation4], 4
      %s317 = int_to_ptr.vmem [resolvable:$true] %s316
      %319 = dma.vmem_to_hbm [thread:$0]  %s317, 32, %s7, [#allocation5]
    $region33: #{_net_e_forward.7} parent=1 // pred_fallthru
      _
    // Predicated region
    $region34: #{_net_e_forward.7} parent=1 // pred_check
      _
    $region35: #{_net_e_forward.7} parent=1 // pred_check_branch
      %321 = sbr.rel (0) target = $region37
    $region36: #{_net_e_forward.7} parent=1 // pred_region
      %322 = dma.done [#allocation3], 32
    $region37: #{_net_e_forward.7} parent=1 // pred_fallthru
      _
    // Predicated region
    $region38: #{_net_e_forward.7} parent=1 // pred_check
      _
    $region39: #{_net_e_forward.7} parent=1 // pred_check_branch
      %324 = sbr.rel (0) target = $region41
    $region40: #{_net_e_forward.7} parent=1 // pred_region
      %325 = dma.done [#allocation5], 32
    $region41: #{_net_e_forward.7} parent=1 // pred_fallthru
      _
    %326 = vsyncpa [#allocation3], 1
    %327 = vsyncpa [#allocation5], 1

</llo_original>
